<compile_context>
chip_gen: v7x
topology: tpu7x:2x2x1
jax: 0.10.0
libtpu: 0.0.40
codegen_flags: <defaults>
</compile_context>

<pallas_src>
import functools
import math

import jax
import jax.numpy as jnp
import numpy as np
from jax import lax
from jax.experimental import pallas as pl
from jax.experimental.pallas import tpu as pltpu


def _corr_kernel(p1_ref, p2_ref, out_ref, *, C, K, stride1, stride2,
                 outH, outW, RH, RW, gw):
    """Grid = (batch, dy).  One step computes the gw dx-channels for one dy.

    p1_ref : (1, C, RH, RW)        image-1 correlation window (from padded img1).
    p2_ref : (1, C, Hfull, Wfull)  image-2 search window; Hfull = 2*r*s2 + RH,
                                   Wfull = 2*r*s2 + RW (from padded img2).
    out_ref: (1, gw, outH, outW)   output channels d = dy*gw + dx for this dy.
    """
    dy = pl.program_id(1)
    inv = jnp.float32(1.0 / (K * K * C))

    # Image-1 window: loaded/upcast once per step (no-op upcast for f32 input).
    p1 = p1_ref[0].astype(jnp.float32)                          # (C, RH, RW)

    # Image-2 rows needed for this dy: one dynamic sublane-offset slice,
    # upcast hoisted out of the dx loop.
    p2row = p2_ref[0, :, pl.ds(dy * stride2, RH), :].astype(jnp.float32)
    # (C, RH, Wfull); lane axis = full search width.

    for dx in range(gw):
        # Contiguous static lane-offset window of the resident slab: stride2
        # only changes the offset, never the access stride -> no strided loads.
        slab = lax.slice(p2row, (0, 0, dx * stride2),
                         (C, RH, dx * stride2 + RW))            # (C, RH, RW)
        prod = jnp.sum(p1 * slab, axis=0)                       # (RH, RW)

        # Separable K x K box sum with output stride `stride1`.
        xs = None
        for ii in range(K):                                     # x (lane) dir
            lim = ii + (outW - 1) * stride1 + 1
            sl = lax.slice(prod, (0, ii), (RH, lim),
                           strides=None if stride1 == 1 else (1, stride1))
            xs = sl if xs is None else xs + sl                  # (RH, outW)
        ys = None
        for jj in range(K):                                     # y (sublane) dir
            lim = jj + (outH - 1) * stride1 + 1
            sl = lax.slice(xs, (jj, 0), (lim, outW),
                           strides=None if stride1 == 1 else (stride1, 1))
            ys = sl if ys is None else ys + sl                  # (outH, outW)

        out_ref[0, dx] = (ys * inv).astype(out_ref.dtype)


def correlation_forward(input1, input2, pad_size=3, kernel_size=3,
                        max_displacement=20, stride1=1, stride2=2,
                        corr_multiply=1):
    # TODO(synk): corr_multiply only selects the backward mode in
    # correlation_cuda; the forward pass is always multiplicative, so it is
    # accepted but unused.
    B, C, H, W = input1.shape
    K = kernel_size
    kr = (K - 1) // 2
    md = max_displacement
    s1, s2 = stride1, stride2
    pH, pW = H + 2 * pad_size, W + 2 * pad_size
    outH = int(math.ceil((pH - 2 * (md + kr)) / s1))
    outW = int(math.ceil((pW - 2 * (md + kr)) / s1))
    if outH <= 0 or outW <= 0:
        raise ValueError("correlation: empty output — input spatial size too "
                         "small for pad/max_displacement/kernel_size")
    r = md // s2
    gw = 2 * r + 1
    D = gw * gw
    RH = (outH - 1) * s1 + K
    RW = (outW - 1) * s1 + K
    off = md - r * s2                      # >= 0 by construction
    Hfull = 2 * r * s2 + RH                # fits inside the padded image
    Wfull = 2 * r * s2 + RW

    pad = ((0, 0), (0, 0), (pad_size, pad_size), (pad_size, pad_size))
    # Image 1: only the central RH x RW window is ever read.
    p1w = jnp.pad(input1, pad)[:, :, md:md + RH, md:md + RW]            # (B,C,RH,RW)
    # Image 2: search window covering every displacement's contiguous sub-window.
    p2w = jnp.pad(input2, pad)[:, :, off:off + Hfull, off:off + Wfull]  # (B,C,Hfull,Wfull)

    # Size the scoped VMEM limit from the actual (padded, double-buffered) blocks.
    def _pad_bytes(lead, sub, lane, itemsize):
        return lead * (-(-sub // 8) * 8) * (-(-lane // 128) * 128) * itemsize

    need = 2 * (_pad_bytes(C, RH, RW, jnp.dtype(input1.dtype).itemsize)
                + _pad_bytes(C, Hfull, Wfull, jnp.dtype(input2.dtype).itemsize)
                + _pad_bytes(gw, outH, outW, 4)) + (4 << 20)
    vmem_limit = int(min(max(need, 32 << 20), 100 << 20))

    kern = functools.partial(_corr_kernel, C=C, K=K, stride1=s1, stride2=s2,
                             outH=outH, outW=outW, RH=RH, RW=RW, gw=gw)

    # Output is produced directly in NCHW (B, D, outH, outW) with d = dy*gw+dx,
    # exactly the correlation_cuda channel ordering — no wrapper transpose.
    out = pl.pallas_call(
        kern,
        out_shape=jax.ShapeDtypeStruct((B, D, outH, outW), jnp.float32),
        grid_spec=pltpu.PrefetchScalarGridSpec(
            num_scalar_prefetch=0,
            grid=(B, gw),
            in_specs=[
                # Constant block index over dy -> stays resident, no re-DMA.
                pl.BlockSpec((1, C, RH, RW), lambda b, dy: (b, 0, 0, 0)),
                pl.BlockSpec((1, C, Hfull, Wfull), lambda b, dy: (b, 0, 0, 0)),
            ],
            out_specs=pl.BlockSpec((1, gw, outH, outW),
                                   lambda b, dy: (b, dy, 0, 0)),
        ),
        compiler_params=pltpu.CompilerParams(
            dimension_semantics=("parallel", "parallel"),
            vmem_limit_bytes=vmem_limit),
    )(p1w, p2w)
    return out


def correlation_ref_np(x1, x2, pad_size, K, md, stride1, stride2):
    """Pure numpy reference mirroring correlation_cuda.forward."""
    x1 = np.asarray(x1, np.float32)
    x2 = np.asarray(x2, np.float32)
    B, C, H, W = x1.shape
    kr = (K - 1) // 2
    pad = ((0, 0), (0, 0), (pad_size, pad_size), (pad_size, pad_size))
    p1 = np.pad(x1, pad)
    p2 = np.pad(x2, pad)
    pH, pW = H + 2 * pad_size, W + 2 * pad_size
    outH = int(math.ceil((pH - 2 * (md + kr)) / stride1))
    outW = int(math.ceil((pW - 2 * (md + kr)) / stride1))
    r = md // stride2
    gw = 2 * r + 1
    out = np.zeros((B, gw * gw, outH, outW), np.float32)
    for d in range(gw * gw):
        i = d % gw
        j = d // gw
        s2x = (i - r) * stride2
        s2y = (j - r) * stride2
        for jj in range(K):
            for ii in range(K):
                r1 = p1[:, :, md + jj: md + jj + (outH - 1) * stride1 + 1: stride1,
                              md + ii: md + ii + (outW - 1) * stride1 + 1: stride1]
                r2 = p2[:, :, md + s2y + jj: md + s2y + jj + (outH - 1) * stride1 + 1: stride1,
                              md + s2x + ii: md + s2x + ii + (outW - 1) * stride1 + 1: stride1]
                out[:, d] += (r1 * r2).sum(axis=1)
    return out / float(K * K * C)


if __name__ == "__main__":
    key = jax.random.PRNGKey(0)
    k1, k2 = jax.random.split(key)
    # Module defaults: pad=3, kernel=3, max_disp=20, stride1=1, stride2=2
    # -> need H, W >= 37 for a non-empty output.
    B, C, H, W = 2, 4, 40, 40
    x1 = jax.random.normal(k1, (B, C, H, W), jnp.float32)
    x2 = jax.random.normal(k2, (B, C, H, W), jnp.float32)

    out = correlation_forward(x1, x2)            # defaults of the Correlation module
    out = jax.block_until_ready(out)

    ref = correlation_ref_np(x1, x2, pad_size=3, K=3, md=20, stride1=1, stride2=2)
    assert out.shape == ref.shape, (out.shape, ref.shape)
    np.testing.assert_allclose(np.asarray(out), ref, rtol=1e-4, atol=1e-4)
    print("KERNEL_OK")
</pallas_src>

<mosaic_0001>
module attributes {stable_mosaic.version = 11 : i64} {
  func.func @_corr_kernel(%arg0: i32, %arg1: i32, %arg2: memref<1x4x6x6xf32, #tpu.memory_space<vmem>>, %arg3: memref<1x4x46x46xf32, #tpu.memory_space<vmem>>, %arg4: memref<1x21x4x4xf32, #tpu.memory_space<vmem>>) attributes {dimension_semantics = [#tpu.dimension_semantics<parallel>, #tpu.dimension_semantics<parallel>], iteration_bounds = array<i64: 2, 21>, scalar_prefetch = 0 : i64, scratch_operands = 0 : i64, tpu.core_type = #tpu.core_type<tc>, window_params = [{transform_indices = @transform_0, window_bounds = array<i64: 1, 4, 6, 6>}, {transform_indices = @transform_1, window_bounds = array<i64: 1, 4, 46, 46>}, {transform_indices = @transform_2, window_bounds = array<i64: 1, 21, 4, 4>}]} {
    %c0 = arith.constant 0 : index
    %c0_0 = arith.constant 0 : index
    %c0_1 = arith.constant 0 : index
    %c0_2 = arith.constant 0 : index
    %0 = vector.load %arg2[%c0, %c0_0, %c0_1, %c0_2] : memref<1x4x6x6xf32, #tpu.memory_space<vmem>>, vector<1x4x6x6xf32>
    %1 = vector.shape_cast %0 : vector<1x4x6x6xf32> to vector<4x6x6xf32>
    %c2_i32 = arith.constant 2 : i32
    %2 = arith.muli %arg1, %c2_i32 : i32
    %c0_3 = arith.constant 0 : index
    %c0_4 = arith.constant 0 : index
    %3 = arith.index_cast %2 : i32 to index
    %c0_5 = arith.constant 0 : index
    %4 = vector.load %arg3[%c0_3, %c0_4, %3, %c0_5] : memref<1x4x46x46xf32, #tpu.memory_space<vmem>>, vector<1x4x6x46xf32>
    %5 = vector.shape_cast %4 : vector<1x4x6x46xf32> to vector<4x6x46xf32>
    %6 = vector.extract_strided_slice %5 {offsets = [0, 0, 0], sizes = [4, 6, 6], strides = [1, 1, 1]} : vector<4x6x46xf32> to vector<4x6x6xf32>
    %7 = arith.mulf %1, %6 : vector<4x6x6xf32>
    %cst = arith.constant dense<0.000000e+00> : vector<6x6xf32>
    %8 = vector.multi_reduction <add>, %7, %cst [0] : vector<4x6x6xf32> to vector<6x6xf32>
    %9 = vector.extract_strided_slice %8 {offsets = [0, 0], sizes = [6, 4], strides = [1, 1]} : vector<6x6xf32> to vector<6x4xf32>
    %10 = vector.extract_strided_slice %8 {offsets = [0, 1], sizes = [6, 4], strides = [1, 1]} : vector<6x6xf32> to vector<6x4xf32>
    %11 = arith.addf %9, %10 : vector<6x4xf32>
    %12 = vector.extract_strided_slice %8 {offsets = [0, 2], sizes = [6, 4], strides = [1, 1]} : vector<6x6xf32> to vector<6x4xf32>
    %13 = arith.addf %11, %12 : vector<6x4xf32>
    %14 = vector.extract_strided_slice %13 {offsets = [0, 0], sizes = [4, 4], strides = [1, 1]} : vector<6x4xf32> to vector<4x4xf32>
    %15 = vector.extract_strided_slice %13 {offsets = [1, 0], sizes = [4, 4], strides = [1, 1]} : vector<6x4xf32> to vector<4x4xf32>
    %16 = arith.addf %14, %15 : vector<4x4xf32>
    %17 = vector.extract_strided_slice %13 {offsets = [2, 0], sizes = [4, 4], strides = [1, 1]} : vector<6x4xf32> to vector<4x4xf32>
    %18 = arith.addf %16, %17 : vector<4x4xf32>
    %cst_6 = arith.constant 0.027777778 : f32
    %19 = vector.broadcast %cst_6 : f32 to vector<4x4xf32>
    %20 = arith.mulf %18, %19 : vector<4x4xf32>
    %c0_7 = arith.constant 0 : index
    %c0_8 = arith.constant 0 : index
    %c0_9 = arith.constant 0 : index
    %c0_10 = arith.constant 0 : index
    %21 = vector.load %arg4[%c0_7, %c0_8, %c0_9, %c0_10] : memref<1x21x4x4xf32, #tpu.memory_space<vmem>>, vector<1x1x4x4xf32>
    %22 = vector.shape_cast %21 : vector<1x1x4x4xf32> to vector<4x4xf32>
    %23 = vector.shape_cast %20 : vector<4x4xf32> to vector<1x1x4x4xf32>
    tpu.vector_store %arg4[%c0_7, %c0_8, %c0_9, %c0_10], %23 {strides = array<i32>} : memref<1x21x4x4xf32, #tpu.memory_space<vmem>>, vector<1x1x4x4xf32>,
    %24 = vector.extract_strided_slice %5 {offsets = [0, 0, 2], sizes = [4, 6, 6], strides = [1, 1, 1]} : vector<4x6x46xf32> to vector<4x6x6xf32>
    %25 = arith.mulf %1, %24 : vector<4x6x6xf32>
    %cst_11 = arith.constant dense<0.000000e+00> : vector<6x6xf32>
    %26 = vector.multi_reduction <add>, %25, %cst_11 [0] : vector<4x6x6xf32> to vector<6x6xf32>
    %27 = vector.extract_strided_slice %26 {offsets = [0, 0], sizes = [6, 4], strides = [1, 1]} : vector<6x6xf32> to vector<6x4xf32>
    %28 = vector.extract_strided_slice %26 {offsets = [0, 1], sizes = [6, 4], strides = [1, 1]} : vector<6x6xf32> to vector<6x4xf32>
    %29 = arith.addf %27, %28 : vector<6x4xf32>
    %30 = vector.extract_strided_slice %26 {offsets = [0, 2], sizes = [6, 4], strides = [1, 1]} : vector<6x6xf32> to vector<6x4xf32>
    %31 = arith.addf %29, %30 : vector<6x4xf32>
    %32 = vector.extract_strided_slice %31 {offsets = [0, 0], sizes = [4, 4], strides = [1, 1]} : vector<6x4xf32> to vector<4x4xf32>
    %33 = vector.extract_strided_slice %31 {offsets = [1, 0], sizes = [4, 4], strides = [1, 1]} : vector<6x4xf32> to vector<4x4xf32>
    %34 = arith.addf %32, %33 : vector<4x4xf32>
    %35 = vector.extract_strided_slice %31 {offsets = [2, 0], sizes = [4, 4], strides = [1, 1]} : vector<6x4xf32> to vector<4x4xf32>
    %36 = arith.addf %34, %35 : vector<4x4xf32>
    %cst_12 = arith.constant 0.027777778 : f32
    %37 = vector.broadcast %cst_12 : f32 to vector<4x4xf32>
    %38 = arith.mulf %36, %37 : vector<4x4xf32>
    %c0_13 = arith.constant 0 : index
    %c1 = arith.constant 1 : index
    %c0_14 = arith.constant 0 : index
    %c0_15 = arith.constant 0 : index
    %39 = vector.load %arg4[%c0_13, %c1, %c0_14, %c0_15] : memref<1x21x4x4xf32, #tpu.memory_space<vmem>>, vector<1x1x4x4xf32>
    %40 = vector.shape_cast %39 : vector<1x1x4x4xf32> to vector<4x4xf32>
    %41 = vector.shape_cast %38 : vector<4x4xf32> to vector<1x1x4x4xf32>
    tpu.vector_store %arg4[%c0_13, %c1, %c0_14, %c0_15], %41 {strides = array<i32>} : memref<1x21x4x4xf32, #tpu.memory_space<vmem>>, vector<1x1x4x4xf32>,
    %42 = vector.extract_strided_slice %5 {offsets = [0, 0, 4], sizes = [4, 6, 6], strides = [1, 1, 1]} : vector<4x6x46xf32> to vector<4x6x6xf32>
    %43 = arith.mulf %1, %42 : vector<4x6x6xf32>
    %cst_16 = arith.constant dense<0.000000e+00> : vector<6x6xf32>
    %44 = vector.multi_reduction <add>, %43, %cst_16 [0] : vector<4x6x6xf32> to vector<6x6xf32>
    %45 = vector.extract_strided_slice %44 {offsets = [0, 0], sizes = [6, 4], strides = [1, 1]} : vector<6x6xf32> to vector<6x4xf32>
    %46 = vector.extract_strided_slice %44 {offsets = [0, 1], sizes = [6, 4], strides = [1, 1]} : vector<6x6xf32> to vector<6x4xf32>
    %47 = arith.addf %45, %46 : vector<6x4xf32>
    %48 = vector.extract_strided_slice %44 {offsets = [0, 2], sizes = [6, 4], strides = [1, 1]} : vector<6x6xf32> to vector<6x4xf32>
    %49 = arith.addf %47, %48 : vector<6x4xf32>
    %50 = vector.extract_strided_slice %49 {offsets = [0, 0], sizes = [4, 4], strides = [1, 1]} : vector<6x4xf32> to vector<4x4xf32>
    %51 = vector.extract_strided_slice %49 {offsets = [1, 0], sizes = [4, 4], strides = [1, 1]} : vector<6x4xf32> to vector<4x4xf32>
    %52 = arith.addf %50, %51 : vector<4x4xf32>
    %53 = vector.extract_strided_slice %49 {offsets = [2, 0], sizes = [4, 4], strides = [1, 1]} : vector<6x4xf32> to vector<4x4xf32>
    %54 = arith.addf %52, %53 : vector<4x4xf32>
    %cst_17 = arith.constant 0.027777778 : f32
    %55 = vector.broadcast %cst_17 : f32 to vector<4x4xf32>
    %56 = arith.mulf %54, %55 : vector<4x4xf32>
    %c0_18 = arith.constant 0 : index
    %c2 = arith.constant 2 : index
    %c0_19 = arith.constant 0 : index
    %c0_20 = arith.constant 0 : index
    %57 = vector.load %arg4[%c0_18, %c2, %c0_19, %c0_20] : memref<1x21x4x4xf32, #tpu.memory_space<vmem>>, vector<1x1x4x4xf32>
    %58 = vector.shape_cast %57 : vector<1x1x4x4xf32> to vector<4x4xf32>
    %59 = vector.shape_cast %56 : vector<4x4xf32> to vector<1x1x4x4xf32>
    tpu.vector_store %arg4[%c0_18, %c2, %c0_19, %c0_20], %59 {strides = array<i32>} : memref<1x21x4x4xf32, #tpu.memory_space<vmem>>, vector<1x1x4x4xf32>,
    %60 = vector.extract_strided_slice %5 {offsets = [0, 0, 6], sizes = [4, 6, 6], strides = [1, 1, 1]} : vector<4x6x46xf32> to vector<4x6x6xf32>
    %61 = arith.mulf %1, %60 : vector<4x6x6xf32>
    %cst_21 = arith.constant dense<0.000000e+00> : vector<6x6xf32>
    %62 = vector.multi_reduction <add>, %61, %cst_21 [0] : vector<4x6x6xf32> to vector<6x6xf32>
    %63 = vector.extract_strided_slice %62 {offsets = [0, 0], sizes = [6, 4], strides = [1, 1]} : vector<6x6xf32> to vector<6x4xf32>
    %64 = vector.extract_strided_slice %62 {offsets = [0, 1], sizes = [6, 4], strides = [1, 1]} : vector<6x6xf32> to vector<6x4xf32>
    %65 = arith.addf %63, %64 : vector<6x4xf32>
    %66 = vector.extract_strided_slice %62 {offsets = [0, 2], sizes = [6, 4], strides = [1, 1]} : vector<6x6xf32> to vector<6x4xf32>
    %67 = arith.addf %65, %66 : vector<6x4xf32>
    %68 = vector.extract_strided_slice %67 {offsets = [0, 0], sizes = [4, 4], strides = [1, 1]} : vector<6x4xf32> to vector<4x4xf32>
    %69 = vector.extract_strided_slice %67 {offsets = [1, 0], sizes = [4, 4], strides = [1, 1]} : vector<6x4xf32> to vector<4x4xf32>
    %70 = arith.addf %68, %69 : vector<4x4xf32>
    %71 = vector.extract_strided_slice %67 {offsets = [2, 0], sizes = [4, 4], strides = [1, 1]} : vector<6x4xf32> to vector<4x4xf32>
    %72 = arith.addf %70, %71 : vector<4x4xf32>
    %cst_22 = arith.constant 0.027777778 : f32
    %73 = vector.broadcast %cst_22 : f32 to vector<4x4xf32>
    %74 = arith.mulf %72, %73 : vector<4x4xf32>
    %c0_23 = arith.constant 0 : index
    %c3 = arith.constant 3 : index
    %c0_24 = arith.constant 0 : index
    %c0_25 = arith.constant 0 : index
    %75 = vector.load %arg4[%c0_23, %c3, %c0_24, %c0_25] : memref<1x21x4x4xf32, #tpu.memory_space<vmem>>, vector<1x1x4x4xf32>
    %76 = vector.shape_cast %75 : vector<1x1x4x4xf32> to vector<4x4xf32>
    %77 = vector.shape_cast %74 : vector<4x4xf32> to vector<1x1x4x4xf32>
    tpu.vector_store %arg4[%c0_23, %c3, %c0_24, %c0_25], %77 {strides = array<i32>} : memref<1x21x4x4xf32, #tpu.memory_space<vmem>>, vector<1x1x4x4xf32>,
    %78 = vector.extract_strided_slice %5 {offsets = [0, 0, 8], sizes = [4, 6, 6], strides = [1, 1, 1]} : vector<4x6x46xf32> to vector<4x6x6xf32>
    %79 = arith.mulf %1, %78 : vector<4x6x6xf32>
    %cst_26 = arith.constant dense<0.000000e+00> : vector<6x6xf32>
    %80 = vector.multi_reduction <add>, %79, %cst_26 [0] : vector<4x6x6xf32> to vector<6x6xf32>
    %81 = vector.extract_strided_slice %80 {offsets = [0, 0], sizes = [6, 4], strides = [1, 1]} : vector<6x6xf32> to vector<6x4xf32>
    %82 = vector.extract_strided_slice %80 {offsets = [0, 1], sizes = [6, 4], strides = [1, 1]} : vector<6x6xf32> to vector<6x4xf32>
    %83 = arith.addf %81, %82 : vector<6x4xf32>
    %84 = vector.extract_strided_slice %80 {offsets = [0, 2], sizes = [6, 4], strides = [1, 1]} : vector<6x6xf32> to vector<6x4xf32>
    %85 = arith.addf %83, %84 : vector<6x4xf32>
    %86 = vector.extract_strided_slice %85 {offsets = [0, 0], sizes = [4, 4], strides = [1, 1]} : vector<6x4xf32> to vector<4x4xf32>
    %87 = vector.extract_strided_slice %85 {offsets = [1, 0], sizes = [4, 4], strides = [1, 1]} : vector<6x4xf32> to vector<4x4xf32>
    %88 = arith.addf %86, %87 : vector<4x4xf32>
    %89 = vector.extract_strided_slice %85 {offsets = [2, 0], sizes = [4, 4], strides = [1, 1]} : vector<6x4xf32> to vector<4x4xf32>
    %90 = arith.addf %88, %89 : vector<4x4xf32>
    %cst_27 = arith.constant 0.027777778 : f32
    %91 = vector.broadcast %cst_27 : f32 to vector<4x4xf32>
    %92 = arith.mulf %90, %91 : vector<4x4xf32>
    %c0_28 = arith.constant 0 : index
    %c4 = arith.constant 4 : index
    %c0_29 = arith.constant 0 : index
    %c0_30 = arith.constant 0 : index
    %93 = vector.load %arg4[%c0_28, %c4, %c0_29, %c0_30] : memref<1x21x4x4xf32, #tpu.memory_space<vmem>>, vector<1x1x4x4xf32>
    %94 = vector.shape_cast %93 : vector<1x1x4x4xf32> to vector<4x4xf32>
    %95 = vector.shape_cast %92 : vector<4x4xf32> to vector<1x1x4x4xf32>
    tpu.vector_store %arg4[%c0_28, %c4, %c0_29, %c0_30], %95 {strides = array<i32>} : memref<1x21x4x4xf32, #tpu.memory_space<vmem>>, vector<1x1x4x4xf32>,
    %96 = vector.extract_strided_slice %5 {offsets = [0, 0, 10], sizes = [4, 6, 6], strides = [1, 1, 1]} : vector<4x6x46xf32> to vector<4x6x6xf32>
    %97 = arith.mulf %1, %96 : vector<4x6x6xf32>
    %cst_31 = arith.constant dense<0.000000e+00> : vector<6x6xf32>
    %98 = vector.multi_reduction <add>, %97, %cst_31 [0] : vector<4x6x6xf32> to vector<6x6xf32>
    %99 = vector.extract_strided_slice %98 {offsets = [0, 0], sizes = [6, 4], strides = [1, 1]} : vector<6x6xf32> to vector<6x4xf32>
    %100 = vector.extract_strided_slice %98 {offsets = [0, 1], sizes = [6, 4], strides = [1, 1]} : vector<6x6xf32> to vector<6x4xf32>
    %101 = arith.addf %99, %100 : vector<6x4xf32>
    %102 = vector.extract_strided_slice %98 {offsets = [0, 2], sizes = [6, 4], strides = [1, 1]} : vector<6x6xf32> to vector<6x4xf32>
    %103 = arith.addf %101, %102 : vector<6x4xf32>
    %104 = vector.extract_strided_slice %103 {offsets = [0, 0], sizes = [4, 4], strides = [1, 1]} : vector<6x4xf32> to vector<4x4xf32>
    %105 = vector.extract_strided_slice %103 {offsets = [1, 0], sizes = [4, 4], strides = [1, 1]} : vector<6x4xf32> to vector<4x4xf32>
    %106 = arith.addf %104, %105 : vector<4x4xf32>
    %107 = vector.extract_strided_slice %103 {offsets = [2, 0], sizes = [4, 4], strides = [1, 1]} : vector<6x4xf32> to vector<4x4xf32>
    %108 = arith.addf %106, %107 : vector<4x4xf32>
    %cst_32 = arith.constant 0.027777778 : f32
    %109 = vector.broadcast %cst_32 : f32 to vector<4x4xf32>
    %110 = arith.mulf %108, %109 : vector<4x4xf32>
    %c0_33 = arith.constant 0 : index
    %c5 = arith.constant 5 : index
    %c0_34 = arith.constant 0 : index
    %c0_35 = arith.constant 0 : index
    %111 = vector.load %arg4[%c0_33, %c5, %c0_34, %c0_35] : memref<1x21x4x4xf32, #tpu.memory_space<vmem>>, vector<1x1x4x4xf32>
    %112 = vector.shape_cast %111 : vector<1x1x4x4xf32> to vector<4x4xf32>
    %113 = vector.shape_cast %110 : vector<4x4xf32> to vector<1x1x4x4xf32>
    tpu.vector_store %arg4[%c0_33, %c5, %c0_34, %c0_35], %113 {strides = array<i32>} : memref<1x21x4x4xf32, #tpu.memory_space<vmem>>, vector<1x1x4x4xf32>,
    %114 = vector.extract_strided_slice %5 {offsets = [0, 0, 12], sizes = [4, 6, 6], strides = [1, 1, 1]} : vector<4x6x46xf32> to vector<4x6x6xf32>
    %115 = arith.mulf %1, %114 : vector<4x6x6xf32>
    %cst_36 = arith.constant dense<0.000000e+00> : vector<6x6xf32>
    %116 = vector.multi_reduction <add>, %115, %cst_36 [0] : vector<4x6x6xf32> to vector<6x6xf32>
    %117 = vector.extract_strided_slice %116 {offsets = [0, 0], sizes = [6, 4], strides = [1, 1]} : vector<6x6xf32> to vector<6x4xf32>
    %118 = vector.extract_strided_slice %116 {offsets = [0, 1], sizes = [6, 4], strides = [1, 1]} : vector<6x6xf32> to vector<6x4xf32>
    %119 = arith.addf %117, %118 : vector<6x4xf32>
    %120 = vector.extract_strided_slice %116 {offsets = [0, 2], sizes = [6, 4], strides = [1, 1]} : vector<6x6xf32> to vector<6x4xf32>
    %121 = arith.addf %119, %120 : vector<6x4xf32>
    %122 = vector.extract_strided_slice %121 {offsets = [0, 0], sizes = [4, 4], strides = [1, 1]} : vector<6x4xf32> to vector<4x4xf32>
    %123 = vector.extract_strided_slice %121 {offsets = [1, 0], sizes = [4, 4], strides = [1, 1]} : vector<6x4xf32> to vector<4x4xf32>
    %124 = arith.addf %122, %123 : vector<4x4xf32>
    %125 = vector.extract_strided_slice %121 {offsets = [2, 0], sizes = [4, 4], strides = [1, 1]} : vector<6x4xf32> to vector<4x4xf32>
    %126 = arith.addf %124, %125 : vector<4x4xf32>
    %cst_37 = arith.constant 0.027777778 : f32
    %127 = vector.broadcast %cst_37 : f32 to vector<4x4xf32>
    %128 = arith.mulf %126, %127 : vector<4x4xf32>
    %c0_38 = arith.constant 0 : index
    %c6 = arith.constant 6 : index
    %c0_39 = arith.constant 0 : index
    %c0_40 = arith.constant 0 : index
    %129 = vector.load %arg4[%c0_38, %c6, %c0_39, %c0_40] : memref<1x21x4x4xf32, #tpu.memory_space<vmem>>, vector<1x1x4x4xf32>
    %130 = vector.shape_cast %129 : vector<1x1x4x4xf32> to vector<4x4xf32>
    %131 = vector.shape_cast %128 : vector<4x4xf32> to vector<1x1x4x4xf32>
    tpu.vector_store %arg4[%c0_38, %c6, %c0_39, %c0_40], %131 {strides = array<i32>} : memref<1x21x4x4xf32, #tpu.memory_space<vmem>>, vector<1x1x4x4xf32>,
    %132 = vector.extract_strided_slice %5 {offsets = [0, 0, 14], sizes = [4, 6, 6], strides = [1, 1, 1]} : vector<4x6x46xf32> to vector<4x6x6xf32>
    %133 = arith.mulf %1, %132 : vector<4x6x6xf32>
    %cst_41 = arith.constant dense<0.000000e+00> : vector<6x6xf32>
    %134 = vector.multi_reduction <add>, %133, %cst_41 [0] : vector<4x6x6xf32> to vector<6x6xf32>
    %135 = vector.extract_strided_slice %134 {offsets = [0, 0], sizes = [6, 4], strides = [1, 1]} : vector<6x6xf32> to vector<6x4xf32>
    %136 = vector.extract_strided_slice %134 {offsets = [0, 1], sizes = [6, 4], strides = [1, 1]} : vector<6x6xf32> to vector<6x4xf32>
    %137 = arith.addf %135, %136 : vector<6x4xf32>
    %138 = vector.extract_strided_slice %134 {offsets = [0, 2], sizes = [6, 4], strides = [1, 1]} : vector<6x6xf32> to vector<6x4xf32>
    %139 = arith.addf %137, %138 : vector<6x4xf32>
    %140 = vector.extract_strided_slice %139 {offsets = [0, 0], sizes = [4, 4], strides = [1, 1]} : vector<6x4xf32> to vector<4x4xf32>
    %141 = vector.extract_strided_slice %139 {offsets = [1, 0], sizes = [4, 4], strides = [1, 1]} : vector<6x4xf32> to vector<4x4xf32>
    %142 = arith.addf %140, %141 : vector<4x4xf32>
    %143 = vector.extract_strided_slice %139 {offsets = [2, 0], sizes = [4, 4], strides = [1, 1]} : vector<6x4xf32> to vector<4x4xf32>
    %144 = arith.addf %142, %143 : vector<4x4xf32>
    %cst_42 = arith.constant 0.027777778 : f32
    %145 = vector.broadcast %cst_42 : f32 to vector<4x4xf32>
    %146 = arith.mulf %144, %145 : vector<4x4xf32>
    %c0_43 = arith.constant 0 : index
    %c7 = arith.constant 7 : index
    %c0_44 = arith.constant 0 : index
    %c0_45 = arith.constant 0 : index
    %147 = vector.load %arg4[%c0_43, %c7, %c0_44, %c0_45] : memref<1x21x4x4xf32, #tpu.memory_space<vmem>>, vector<1x1x4x4xf32>
    %148 = vector.shape_cast %147 : vector<1x1x4x4xf32> to vector<4x4xf32>
    %149 = vector.shape_cast %146 : vector<4x4xf32> to vector<1x1x4x4xf32>
    tpu.vector_store %arg4[%c0_43, %c7, %c0_44, %c0_45], %149 {strides = array<i32>} : memref<1x21x4x4xf32, #tpu.memory_space<vmem>>, vector<1x1x4x4xf32>,
    %150 = vector.extract_strided_slice %5 {offsets = [0, 0, 16], sizes = [4, 6, 6], strides = [1, 1, 1]} : vector<4x6x46xf32> to vector<4x6x6xf32>
    %151 = arith.mulf %1, %150 : vector<4x6x6xf32>
    %cst_46 = arith.constant dense<0.000000e+00> : vector<6x6xf32>
    %152 = vector.multi_reduction <add>, %151, %cst_46 [0] : vector<4x6x6xf32> to vector<6x6xf32>
    %153 = vector.extract_strided_slice %152 {offsets = [0, 0], sizes = [6, 4], strides = [1, 1]} : vector<6x6xf32> to vector<6x4xf32>
    %154 = vector.extract_strided_slice %152 {offsets = [0, 1], sizes = [6, 4], strides = [1, 1]} : vector<6x6xf32> to vector<6x4xf32>
    %155 = arith.addf %153, %154 : vector<6x4xf32>
    %156 = vector.extract_strided_slice %152 {offsets = [0, 2], sizes = [6, 4], strides = [1, 1]} : vector<6x6xf32> to vector<6x4xf32>
    %157 = arith.addf %155, %156 : vector<6x4xf32>
    %158 = vector.extract_strided_slice %157 {offsets = [0, 0], sizes = [4, 4], strides = [1, 1]} : vector<6x4xf32> to vector<4x4xf32>
    %159 = vector.extract_strided_slice %157 {offsets = [1, 0], sizes = [4, 4], strides = [1, 1]} : vector<6x4xf32> to vector<4x4xf32>
    %160 = arith.addf %158, %159 : vector<4x4xf32>
    %161 = vector.extract_strided_slice %157 {offsets = [2, 0], sizes = [4, 4], strides = [1, 1]} : vector<6x4xf32> to vector<4x4xf32>
    %162 = arith.addf %160, %161 : vector<4x4xf32>
    %cst_47 = arith.constant 0.027777778 : f32
    %163 = vector.broadcast %cst_47 : f32 to vector<4x4xf32>
    %164 = arith.mulf %162, %163 : vector<4x4xf32>
    %c0_48 = arith.constant 0 : index
    %c8 = arith.constant 8 : index
    %c0_49 = arith.constant 0 : index
    %c0_50 = arith.constant 0 : index
    %165 = vector.load %arg4[%c0_48, %c8, %c0_49, %c0_50] : memref<1x21x4x4xf32, #tpu.memory_space<vmem>>, vector<1x1x4x4xf32>
    %166 = vector.shape_cast %165 : vector<1x1x4x4xf32> to vector<4x4xf32>
    %167 = vector.shape_cast %164 : vector<4x4xf32> to vector<1x1x4x4xf32>
    tpu.vector_store %arg4[%c0_48, %c8, %c0_49, %c0_50], %167 {strides = array<i32>} : memref<1x21x4x4xf32, #tpu.memory_space<vmem>>, vector<1x1x4x4xf32>,
    %168 = vector.extract_strided_slice %5 {offsets = [0, 0, 18], sizes = [4, 6, 6], strides = [1, 1, 1]} : vector<4x6x46xf32> to vector<4x6x6xf32>
    %169 = arith.mulf %1, %168 : vector<4x6x6xf32>
    %cst_51 = arith.constant dense<0.000000e+00> : vector<6x6xf32>
    %170 = vector.multi_reduction <add>, %169, %cst_51 [0] : vector<4x6x6xf32> to vector<6x6xf32>
    %171 = vector.extract_strided_slice %170 {offsets = [0, 0], sizes = [6, 4], strides = [1, 1]} : vector<6x6xf32> to vector<6x4xf32>
    %172 = vector.extract_strided_slice %170 {offsets = [0, 1], sizes = [6, 4], strides = [1, 1]} : vector<6x6xf32> to vector<6x4xf32>
    %173 = arith.addf %171, %172 : vector<6x4xf32>
    %174 = vector.extract_strided_slice %170 {offsets = [0, 2], sizes = [6, 4], strides = [1, 1]} : vector<6x6xf32> to vector<6x4xf32>
    %175 = arith.addf %173, %174 : vector<6x4xf32>
    %176 = vector.extract_strided_slice %175 {offsets = [0, 0], sizes = [4, 4], strides = [1, 1]} : vector<6x4xf32> to vector<4x4xf32>
    %177 = vector.extract_strided_slice %175 {offsets = [1, 0], sizes = [4, 4], strides = [1, 1]} : vector<6x4xf32> to vector<4x4xf32>
    %178 = arith.addf %176, %177 : vector<4x4xf32>
    %179 = vector.extract_strided_slice %175 {offsets = [2, 0], sizes = [4, 4], strides = [1, 1]} : vector<6x4xf32> to vector<4x4xf32>
    %180 = arith.addf %178, %179 : vector<4x4xf32>
    %cst_52 = arith.constant 0.027777778 : f32
    %181 = vector.broadcast %cst_52 : f32 to vector<4x4xf32>
    %182 = arith.mulf %180, %181 : vector<4x4xf32>
    %c0_53 = arith.constant 0 : index
    %c9 = arith.constant 9 : index
    %c0_54 = arith.constant 0 : index
    %c0_55 = arith.constant 0 : index
    %183 = vector.load %arg4[%c0_53, %c9, %c0_54, %c0_55] : memref<1x21x4x4xf32, #tpu.memory_space<vmem>>, vector<1x1x4x4xf32>
    %184 = vector.shape_cast %183 : vector<1x1x4x4xf32> to vector<4x4xf32>
    %185 = vector.shape_cast %182 : vector<4x4xf32> to vector<1x1x4x4xf32>
    tpu.vector_store %arg4[%c0_53, %c9, %c0_54, %c0_55], %185 {strides = array<i32>} : memref<1x21x4x4xf32, #tpu.memory_space<vmem>>, vector<1x1x4x4xf32>,
    %186 = vector.extract_strided_slice %5 {offsets = [0, 0, 20], sizes = [4, 6, 6], strides = [1, 1, 1]} : vector<4x6x46xf32> to vector<4x6x6xf32>
    %187 = arith.mulf %1, %186 : vector<4x6x6xf32>
    %cst_56 = arith.constant dense<0.000000e+00> : vector<6x6xf32>
    %188 = vector.multi_reduction <add>, %187, %cst_56 [0] : vector<4x6x6xf32> to vector<6x6xf32>
    %189 = vector.extract_strided_slice %188 {offsets = [0, 0], sizes = [6, 4], strides = [1, 1]} : vector<6x6xf32> to vector<6x4xf32>
    %190 = vector.extract_strided_slice %188 {offsets = [0, 1], sizes = [6, 4], strides = [1, 1]} : vector<6x6xf32> to vector<6x4xf32>
    %191 = arith.addf %189, %190 : vector<6x4xf32>
    %192 = vector.extract_strided_slice %188 {offsets = [0, 2], sizes = [6, 4], strides = [1, 1]} : vector<6x6xf32> to vector<6x4xf32>
    %193 = arith.addf %191, %192 : vector<6x4xf32>
    %194 = vector.extract_strided_slice %193 {offsets = [0, 0], sizes = [4, 4], strides = [1, 1]} : vector<6x4xf32> to vector<4x4xf32>
    %195 = vector.extract_strided_slice %193 {offsets = [1, 0], sizes = [4, 4], strides = [1, 1]} : vector<6x4xf32> to vector<4x4xf32>
    %196 = arith.addf %194, %195 : vector<4x4xf32>
    %197 = vector.extract_strided_slice %193 {offsets = [2, 0], sizes = [4, 4], strides = [1, 1]} : vector<6x4xf32> to vector<4x4xf32>
    %198 = arith.addf %196, %197 : vector<4x4xf32>
    %cst_57 = arith.constant 0.027777778 : f32
    %199 = vector.broadcast %cst_57 : f32 to vector<4x4xf32>
    %200 = arith.mulf %198, %199 : vector<4x4xf32>
    %c0_58 = arith.constant 0 : index
    %c10 = arith.constant 10 : index
    %c0_59 = arith.constant 0 : index
    %c0_60 = arith.constant 0 : index
    %201 = vector.load %arg4[%c0_58, %c10, %c0_59, %c0_60] : memref<1x21x4x4xf32, #tpu.memory_space<vmem>>, vector<1x1x4x4xf32>
    %202 = vector.shape_cast %201 : vector<1x1x4x4xf32> to vector<4x4xf32>
    %203 = vector.shape_cast %200 : vector<4x4xf32> to vector<1x1x4x4xf32>
    tpu.vector_store %arg4[%c0_58, %c10, %c0_59, %c0_60], %203 {strides = array<i32>} : memref<1x21x4x4xf32, #tpu.memory_space<vmem>>, vector<1x1x4x4xf32>,
    %204 = vector.extract_strided_slice %5 {offsets = [0, 0, 22], sizes = [4, 6, 6], strides = [1, 1, 1]} : vector<4x6x46xf32> to vector<4x6x6xf32>
    %205 = arith.mulf %1, %204 : vector<4x6x6xf32>
    %cst_61 = arith.constant dense<0.000000e+00> : vector<6x6xf32>
    %206 = vector.multi_reduction <add>, %205, %cst_61 [0] : vector<4x6x6xf32> to vector<6x6xf32>
    %207 = vector.extract_strided_slice %206 {offsets = [0, 0], sizes = [6, 4], strides = [1, 1]} : vector<6x6xf32> to vector<6x4xf32>
    %208 = vector.extract_strided_slice %206 {offsets = [0, 1], sizes = [6, 4], strides = [1, 1]} : vector<6x6xf32> to vector<6x4xf32>
    %209 = arith.addf %207, %208 : vector<6x4xf32>
    %210 = vector.extract_strided_slice %206 {offsets = [0, 2], sizes = [6, 4], strides = [1, 1]} : vector<6x6xf32> to vector<6x4xf32>
    %211 = arith.addf %209, %210 : vector<6x4xf32>
    %212 = vector.extract_strided_slice %211 {offsets = [0, 0], sizes = [4, 4], strides = [1, 1]} : vector<6x4xf32> to vector<4x4xf32>
    %213 = vector.extract_strided_slice %211 {offsets = [1, 0], sizes = [4, 4], strides = [1, 1]} : vector<6x4xf32> to vector<4x4xf32>
    %214 = arith.addf %212, %213 : vector<4x4xf32>
    %215 = vector.extract_strided_slice %211 {offsets = [2, 0], sizes = [4, 4], strides = [1, 1]} : vector<6x4xf32> to vector<4x4xf32>
    %216 = arith.addf %214, %215 : vector<4x4xf32>
    %cst_62 = arith.constant 0.027777778 : f32
    %217 = vector.broadcast %cst_62 : f32 to vector<4x4xf32>
    %218 = arith.mulf %216, %217 : vector<4x4xf32>
    %c0_63 = arith.constant 0 : index
    %c11 = arith.constant 11 : index
    %c0_64 = arith.constant 0 : index
    %c0_65 = arith.constant 0 : index
    %219 = vector.load %arg4[%c0_63, %c11, %c0_64, %c0_65] : memref<1x21x4x4xf32, #tpu.memory_space<vmem>>, vector<1x1x4x4xf32>
    %220 = vector.shape_cast %219 : vector<1x1x4x4xf32> to vector<4x4xf32>
    %221 = vector.shape_cast %218 : vector<4x4xf32> to vector<1x1x4x4xf32>
    tpu.vector_store %arg4[%c0_63, %c11, %c0_64, %c0_65], %221 {strides = array<i32>} : memref<1x21x4x4xf32, #tpu.memory_space<vmem>>, vector<1x1x4x4xf32>,
    %222 = vector.extract_strided_slice %5 {offsets = [0, 0, 24], sizes = [4, 6, 6], strides = [1, 1, 1]} : vector<4x6x46xf32> to vector<4x6x6xf32>
    %223 = arith.mulf %1, %222 : vector<4x6x6xf32>
    %cst_66 = arith.constant dense<0.000000e+00> : vector<6x6xf32>
    %224 = vector.multi_reduction <add>, %223, %cst_66 [0] : vector<4x6x6xf32> to vector<6x6xf32>
    %225 = vector.extract_strided_slice %224 {offsets = [0, 0], sizes = [6, 4], strides = [1, 1]} : vector<6x6xf32> to vector<6x4xf32>
    %226 = vector.extract_strided_slice %224 {offsets = [0, 1], sizes = [6, 4], strides = [1, 1]} : vector<6x6xf32> to vector<6x4xf32>
    %227 = arith.addf %225, %226 : vector<6x4xf32>
    %228 = vector.extract_strided_slice %224 {offsets = [0, 2], sizes = [6, 4], strides = [1, 1]} : vector<6x6xf32> to vector<6x4xf32>
    %229 = arith.addf %227, %228 : vector<6x4xf32>
    %230 = vector.extract_strided_slice %229 {offsets = [0, 0], sizes = [4, 4], strides = [1, 1]} : vector<6x4xf32> to vector<4x4xf32>
    %231 = vector.extract_strided_slice %229 {offsets = [1, 0], sizes = [4, 4], strides = [1, 1]} : vector<6x4xf32> to vector<4x4xf32>
    %232 = arith.addf %230, %231 : vector<4x4xf32>
    %233 = vector.extract_strided_slice %229 {offsets = [2, 0], sizes = [4, 4], strides = [1, 1]} : vector<6x4xf32> to vector<4x4xf32>
    %234 = arith.addf %232, %233 : vector<4x4xf32>
    %cst_67 = arith.constant 0.027777778 : f32
    %235 = vector.broadcast %cst_67 : f32 to vector<4x4xf32>
    %236 = arith.mulf %234, %235 : vector<4x4xf32>
    %c0_68 = arith.constant 0 : index
    %c12 = arith.constant 12 : index
    %c0_69 = arith.constant 0 : index
    %c0_70 = arith.constant 0 : index
    %237 = vector.load %arg4[%c0_68, %c12, %c0_69, %c0_70] : memref<1x21x4x4xf32, #tpu.memory_space<vmem>>, vector<1x1x4x4xf32>
    %238 = vector.shape_cast %237 : vector<1x1x4x4xf32> to vector<4x4xf32>
    %239 = vector.shape_cast %236 : vector<4x4xf32> to vector<1x1x4x4xf32>
    tpu.vector_store %arg4[%c0_68, %c12, %c0_69, %c0_70], %239 {strides = array<i32>} : memref<1x21x4x4xf32, #tpu.memory_space<vmem>>, vector<1x1x4x4xf32>,
    %240 = vector.extract_strided_slice %5 {offsets = [0, 0, 26], sizes = [4, 6, 6], strides = [1, 1, 1]} : vector<4x6x46xf32> to vector<4x6x6xf32>
    %241 = arith.mulf %1, %240 : vector<4x6x6xf32>
    %cst_71 = arith.constant dense<0.000000e+00> : vector<6x6xf32>
    %242 = vector.multi_reduction <add>, %241, %cst_71 [0] : vector<4x6x6xf32> to vector<6x6xf32>
    %243 = vector.extract_strided_slice %242 {offsets = [0, 0], sizes = [6, 4], strides = [1, 1]} : vector<6x6xf32> to vector<6x4xf32>
    %244 = vector.extract_strided_slice %242 {offsets = [0, 1], sizes = [6, 4], strides = [1, 1]} : vector<6x6xf32> to vector<6x4xf32>
    %245 = arith.addf %243, %244 : vector<6x4xf32>
    %246 = vector.extract_strided_slice %242 {offsets = [0, 2], sizes = [6, 4], strides = [1, 1]} : vector<6x6xf32> to vector<6x4xf32>
    %247 = arith.addf %245, %246 : vector<6x4xf32>
    %248 = vector.extract_strided_slice %247 {offsets = [0, 0], sizes = [4, 4], strides = [1, 1]} : vector<6x4xf32> to vector<4x4xf32>
    %249 = vector.extract_strided_slice %247 {offsets = [1, 0], sizes = [4, 4], strides = [1, 1]} : vector<6x4xf32> to vector<4x4xf32>
    %250 = arith.addf %248, %249 : vector<4x4xf32>
    %251 = vector.extract_strided_slice %247 {offsets = [2, 0], sizes = [4, 4], strides = [1, 1]} : vector<6x4xf32> to vector<4x4xf32>
    %252 = arith.addf %250, %251 : vector<4x4xf32>
    %cst_72 = arith.constant 0.027777778 : f32
    %253 = vector.broadcast %cst_72 : f32 to vector<4x4xf32>
    %254 = arith.mulf %252, %253 : vector<4x4xf32>
    %c0_73 = arith.constant 0 : index
    %c13 = arith.constant 13 : index
    %c0_74 = arith.constant 0 : index
    %c0_75 = arith.constant 0 : index
    %255 = vector.load %arg4[%c0_73, %c13, %c0_74, %c0_75] : memref<1x21x4x4xf32, #tpu.memory_space<vmem>>, vector<1x1x4x4xf32>
    %256 = vector.shape_cast %255 : vector<1x1x4x4xf32> to vector<4x4xf32>
    %257 = vector.shape_cast %254 : vector<4x4xf32> to vector<1x1x4x4xf32>
    tpu.vector_store %arg4[%c0_73, %c13, %c0_74, %c0_75], %257 {strides = array<i32>} : memref<1x21x4x4xf32, #tpu.memory_space<vmem>>, vector<1x1x4x4xf32>,
    %258 = vector.extract_strided_slice %5 {offsets = [0, 0, 28], sizes = [4, 6, 6], strides = [1, 1, 1]} : vector<4x6x46xf32> to vector<4x6x6xf32>
    %259 = arith.mulf %1, %258 : vector<4x6x6xf32>
    %cst_76 = arith.constant dense<0.000000e+00> : vector<6x6xf32>
    %260 = vector.multi_reduction <add>, %259, %cst_76 [0] : vector<4x6x6xf32> to vector<6x6xf32>
    %261 = vector.extract_strided_slice %260 {offsets = [0, 0], sizes = [6, 4], strides = [1, 1]} : vector<6x6xf32> to vector<6x4xf32>
    %262 = vector.extract_strided_slice %260 {offsets = [0, 1], sizes = [6, 4], strides = [1, 1]} : vector<6x6xf32> to vector<6x4xf32>
    %263 = arith.addf %261, %262 : vector<6x4xf32>
    %264 = vector.extract_strided_slice %260 {offsets = [0, 2], sizes = [6, 4], strides = [1, 1]} : vector<6x6xf32> to vector<6x4xf32>
    %265 = arith.addf %263, %264 : vector<6x4xf32>
    %266 = vector.extract_strided_slice %265 {offsets = [0, 0], sizes = [4, 4], strides = [1, 1]} : vector<6x4xf32> to vector<4x4xf32>
    %267 = vector.extract_strided_slice %265 {offsets = [1, 0], sizes = [4, 4], strides = [1, 1]} : vector<6x4xf32> to vector<4x4xf32>
    %268 = arith.addf %266, %267 : vector<4x4xf32>
    %269 = vector.extract_strided_slice %265 {offsets = [2, 0], sizes = [4, 4], strides = [1, 1]} : vector<6x4xf32> to vector<4x4xf32>
    %270 = arith.addf %268, %269 : vector<4x4xf32>
    %cst_77 = arith.constant 0.027777778 : f32
    %271 = vector.broadcast %cst_77 : f32 to vector<4x4xf32>
    %272 = arith.mulf %270, %271 : vector<4x4xf32>
    %c0_78 = arith.constant 0 : index
    %c14 = arith.constant 14 : index
    %c0_79 = arith.constant 0 : index
    %c0_80 = arith.constant 0 : index
    %273 = vector.load %arg4[%c0_78, %c14, %c0_79, %c0_80] : memref<1x21x4x4xf32, #tpu.memory_space<vmem>>, vector<1x1x4x4xf32>
    %274 = vector.shape_cast %273 : vector<1x1x4x4xf32> to vector<4x4xf32>
    %275 = vector.shape_cast %272 : vector<4x4xf32> to vector<1x1x4x4xf32>
    tpu.vector_store %arg4[%c0_78, %c14, %c0_79, %c0_80], %275 {strides = array<i32>} : memref<1x21x4x4xf32, #tpu.memory_space<vmem>>, vector<1x1x4x4xf32>,
    %276 = vector.extract_strided_slice %5 {offsets = [0, 0, 30], sizes = [4, 6, 6], strides = [1, 1, 1]} : vector<4x6x46xf32> to vector<4x6x6xf32>
    %277 = arith.mulf %1, %276 : vector<4x6x6xf32>
    %cst_81 = arith.constant dense<0.000000e+00> : vector<6x6xf32>
    %278 = vector.multi_reduction <add>, %277, %cst_81 [0] : vector<4x6x6xf32> to vector<6x6xf32>
    %279 = vector.extract_strided_slice %278 {offsets = [0, 0], sizes = [6, 4], strides = [1, 1]} : vector<6x6xf32> to vector<6x4xf32>
    %280 = vector.extract_strided_slice %278 {offsets = [0, 1], sizes = [6, 4], strides = [1, 1]} : vector<6x6xf32> to vector<6x4xf32>
    %281 = arith.addf %279, %280 : vector<6x4xf32>
    %282 = vector.extract_strided_slice %278 {offsets = [0, 2], sizes = [6, 4], strides = [1, 1]} : vector<6x6xf32> to vector<6x4xf32>
    %283 = arith.addf %281, %282 : vector<6x4xf32>
    %284 = vector.extract_strided_slice %283 {offsets = [0, 0], sizes = [4, 4], strides = [1, 1]} : vector<6x4xf32> to vector<4x4xf32>
    %285 = vector.extract_strided_slice %283 {offsets = [1, 0], sizes = [4, 4], strides = [1, 1]} : vector<6x4xf32> to vector<4x4xf32>
    %286 = arith.addf %284, %285 : vector<4x4xf32>
    %287 = vector.extract_strided_slice %283 {offsets = [2, 0], sizes = [4, 4], strides = [1, 1]} : vector<6x4xf32> to vector<4x4xf32>
    %288 = arith.addf %286, %287 : vector<4x4xf32>
    %cst_82 = arith.constant 0.027777778 : f32
    %289 = vector.broadcast %cst_82 : f32 to vector<4x4xf32>
    %290 = arith.mulf %288, %289 : vector<4x4xf32>
    %c0_83 = arith.constant 0 : index
    %c15 = arith.constant 15 : index
    %c0_84 = arith.constant 0 : index
    %c0_85 = arith.constant 0 : index
    %291 = vector.load %arg4[%c0_83, %c15, %c0_84, %c0_85] : memref<1x21x4x4xf32, #tpu.memory_space<vmem>>, vector<1x1x4x4xf32>
    %292 = vector.shape_cast %291 : vector<1x1x4x4xf32> to vector<4x4xf32>
    %293 = vector.shape_cast %290 : vector<4x4xf32> to vector<1x1x4x4xf32>
    tpu.vector_store %arg4[%c0_83, %c15, %c0_84, %c0_85], %293 {strides = array<i32>} : memref<1x21x4x4xf32, #tpu.memory_space<vmem>>, vector<1x1x4x4xf32>,
    %294 = vector.extract_strided_slice %5 {offsets = [0, 0, 32], sizes = [4, 6, 6], strides = [1, 1, 1]} : vector<4x6x46xf32> to vector<4x6x6xf32>
    %295 = arith.mulf %1, %294 : vector<4x6x6xf32>
    %cst_86 = arith.constant dense<0.000000e+00> : vector<6x6xf32>
    %296 = vector.multi_reduction <add>, %295, %cst_86 [0] : vector<4x6x6xf32> to vector<6x6xf32>
    %297 = vector.extract_strided_slice %296 {offsets = [0, 0], sizes = [6, 4], strides = [1, 1]} : vector<6x6xf32> to vector<6x4xf32>
    %298 = vector.extract_strided_slice %296 {offsets = [0, 1], sizes = [6, 4], strides = [1, 1]} : vector<6x6xf32> to vector<6x4xf32>
    %299 = arith.addf %297, %298 : vector<6x4xf32>
    %300 = vector.extract_strided_slice %296 {offsets = [0, 2], sizes = [6, 4], strides = [1, 1]} : vector<6x6xf32> to vector<6x4xf32>
    %301 = arith.addf %299, %300 : vector<6x4xf32>
    %302 = vector.extract_strided_slice %301 {offsets = [0, 0], sizes = [4, 4], strides = [1, 1]} : vector<6x4xf32> to vector<4x4xf32>
    %303 = vector.extract_strided_slice %301 {offsets = [1, 0], sizes = [4, 4], strides = [1, 1]} : vector<6x4xf32> to vector<4x4xf32>
    %304 = arith.addf %302, %303 : vector<4x4xf32>
    %305 = vector.extract_strided_slice %301 {offsets = [2, 0], sizes = [4, 4], strides = [1, 1]} : vector<6x4xf32> to vector<4x4xf32>
    %306 = arith.addf %304, %305 : vector<4x4xf32>
    %cst_87 = arith.constant 0.027777778 : f32
    %307 = vector.broadcast %cst_87 : f32 to vector<4x4xf32>
    %308 = arith.mulf %306, %307 : vector<4x4xf32>
    %c0_88 = arith.constant 0 : index
    %c16 = arith.constant 16 : index
    %c0_89 = arith.constant 0 : index
    %c0_90 = arith.constant 0 : index
    %309 = vector.load %arg4[%c0_88, %c16, %c0_89, %c0_90] : memref<1x21x4x4xf32, #tpu.memory_space<vmem>>, vector<1x1x4x4xf32>
    %310 = vector.shape_cast %309 : vector<1x1x4x4xf32> to vector<4x4xf32>
    %311 = vector.shape_cast %308 : vector<4x4xf32> to vector<1x1x4x4xf32>
    tpu.vector_store %arg4[%c0_88, %c16, %c0_89, %c0_90], %311 {strides = array<i32>} : memref<1x21x4x4xf32, #tpu.memory_space<vmem>>, vector<1x1x4x4xf32>,
    %312 = vector.extract_strided_slice %5 {offsets = [0, 0, 34], sizes = [4, 6, 6], strides = [1, 1, 1]} : vector<4x6x46xf32> to vector<4x6x6xf32>
    %313 = arith.mulf %1, %312 : vector<4x6x6xf32>
    %cst_91 = arith.constant dense<0.000000e+00> : vector<6x6xf32>
    %314 = vector.multi_reduction <add>, %313, %cst_91 [0] : vector<4x6x6xf32> to vector<6x6xf32>
    %315 = vector.extract_strided_slice %314 {offsets = [0, 0], sizes = [6, 4], strides = [1, 1]} : vector<6x6xf32> to vector<6x4xf32>
    %316 = vector.extract_strided_slice %314 {offsets = [0, 1], sizes = [6, 4], strides = [1, 1]} : vector<6x6xf32> to vector<6x4xf32>
    %317 = arith.addf %315, %316 : vector<6x4xf32>
    %318 = vector.extract_strided_slice %314 {offsets = [0, 2], sizes = [6, 4], strides = [1, 1]} : vector<6x6xf32> to vector<6x4xf32>
    %319 = arith.addf %317, %318 : vector<6x4xf32>
    %320 = vector.extract_strided_slice %319 {offsets = [0, 0], sizes = [4, 4], strides = [1, 1]} : vector<6x4xf32> to vector<4x4xf32>
    %321 = vector.extract_strided_slice %319 {offsets = [1, 0], sizes = [4, 4], strides = [1, 1]} : vector<6x4xf32> to vector<4x4xf32>
    %322 = arith.addf %320, %321 : vector<4x4xf32>
    %323 = vector.extract_strided_slice %319 {offsets = [2, 0], sizes = [4, 4], strides = [1, 1]} : vector<6x4xf32> to vector<4x4xf32>
    %324 = arith.addf %322, %323 : vector<4x4xf32>
    %cst_92 = arith.constant 0.027777778 : f32
    %325 = vector.broadcast %cst_92 : f32 to vector<4x4xf32>
    %326 = arith.mulf %324, %325 : vector<4x4xf32>
    %c0_93 = arith.constant 0 : index
    %c17 = arith.constant 17 : index
    %c0_94 = arith.constant 0 : index
    %c0_95 = arith.constant 0 : index
    %327 = vector.load %arg4[%c0_93, %c17, %c0_94, %c0_95] : memref<1x21x4x4xf32, #tpu.memory_space<vmem>>, vector<1x1x4x4xf32>
    %328 = vector.shape_cast %327 : vector<1x1x4x4xf32> to vector<4x4xf32>
    %329 = vector.shape_cast %326 : vector<4x4xf32> to vector<1x1x4x4xf32>
    tpu.vector_store %arg4[%c0_93, %c17, %c0_94, %c0_95], %329 {strides = array<i32>} : memref<1x21x4x4xf32, #tpu.memory_space<vmem>>, vector<1x1x4x4xf32>,
    %330 = vector.extract_strided_slice %5 {offsets = [0, 0, 36], sizes = [4, 6, 6], strides = [1, 1, 1]} : vector<4x6x46xf32> to vector<4x6x6xf32>
    %331 = arith.mulf %1, %330 : vector<4x6x6xf32>
    %cst_96 = arith.constant dense<0.000000e+00> : vector<6x6xf32>
    %332 = vector.multi_reduction <add>, %331, %cst_96 [0] : vector<4x6x6xf32> to vector<6x6xf32>
    %333 = vector.extract_strided_slice %332 {offsets = [0, 0], sizes = [6, 4], strides = [1, 1]} : vector<6x6xf32> to vector<6x4xf32>
    %334 = vector.extract_strided_slice %332 {offsets = [0, 1], sizes = [6, 4], strides = [1, 1]} : vector<6x6xf32> to vector<6x4xf32>
    %335 = arith.addf %333, %334 : vector<6x4xf32>
    %336 = vector.extract_strided_slice %332 {offsets = [0, 2], sizes = [6, 4], strides = [1, 1]} : vector<6x6xf32> to vector<6x4xf32>
    %337 = arith.addf %335, %336 : vector<6x4xf32>
    %338 = vector.extract_strided_slice %337 {offsets = [0, 0], sizes = [4, 4], strides = [1, 1]} : vector<6x4xf32> to vector<4x4xf32>
    %339 = vector.extract_strided_slice %337 {offsets = [1, 0], sizes = [4, 4], strides = [1, 1]} : vector<6x4xf32> to vector<4x4xf32>
    %340 = arith.addf %338, %339 : vector<4x4xf32>
    %341 = vector.extract_strided_slice %337 {offsets = [2, 0], sizes = [4, 4], strides = [1, 1]} : vector<6x4xf32> to vector<4x4xf32>
    %342 = arith.addf %340, %341 : vector<4x4xf32>
    %cst_97 = arith.constant 0.027777778 : f32
    %343 = vector.broadcast %cst_97 : f32 to vector<4x4xf32>
    %344 = arith.mulf %342, %343 : vector<4x4xf32>
    %c0_98 = arith.constant 0 : index
    %c18 = arith.constant 18 : index
    %c0_99 = arith.constant 0 : index
    %c0_100 = arith.constant 0 : index
    %345 = vector.load %arg4[%c0_98, %c18, %c0_99, %c0_100] : memref<1x21x4x4xf32, #tpu.memory_space<vmem>>, vector<1x1x4x4xf32>
    %346 = vector.shape_cast %345 : vector<1x1x4x4xf32> to vector<4x4xf32>
    %347 = vector.shape_cast %344 : vector<4x4xf32> to vector<1x1x4x4xf32>
    tpu.vector_store %arg4[%c0_98, %c18, %c0_99, %c0_100], %347 {strides = array<i32>} : memref<1x21x4x4xf32, #tpu.memory_space<vmem>>, vector<1x1x4x4xf32>,
    %348 = vector.extract_strided_slice %5 {offsets = [0, 0, 38], sizes = [4, 6, 6], strides = [1, 1, 1]} : vector<4x6x46xf32> to vector<4x6x6xf32>
    %349 = arith.mulf %1, %348 : vector<4x6x6xf32>
    %cst_101 = arith.constant dense<0.000000e+00> : vector<6x6xf32>
    %350 = vector.multi_reduction <add>, %349, %cst_101 [0] : vector<4x6x6xf32> to vector<6x6xf32>
    %351 = vector.extract_strided_slice %350 {offsets = [0, 0], sizes = [6, 4], strides = [1, 1]} : vector<6x6xf32> to vector<6x4xf32>
    %352 = vector.extract_strided_slice %350 {offsets = [0, 1], sizes = [6, 4], strides = [1, 1]} : vector<6x6xf32> to vector<6x4xf32>
    %353 = arith.addf %351, %352 : vector<6x4xf32>
    %354 = vector.extract_strided_slice %350 {offsets = [0, 2], sizes = [6, 4], strides = [1, 1]} : vector<6x6xf32> to vector<6x4xf32>
    %355 = arith.addf %353, %354 : vector<6x4xf32>
    %356 = vector.extract_strided_slice %355 {offsets = [0, 0], sizes = [4, 4], strides = [1, 1]} : vector<6x4xf32> to vector<4x4xf32>
    %357 = vector.extract_strided_slice %355 {offsets = [1, 0], sizes = [4, 4], strides = [1, 1]} : vector<6x4xf32> to vector<4x4xf32>
    %358 = arith.addf %356, %357 : vector<4x4xf32>
    %359 = vector.extract_strided_slice %355 {offsets = [2, 0], sizes = [4, 4], strides = [1, 1]} : vector<6x4xf32> to vector<4x4xf32>
    %360 = arith.addf %358, %359 : vector<4x4xf32>
    %cst_102 = arith.constant 0.027777778 : f32
    %361 = vector.broadcast %cst_102 : f32 to vector<4x4xf32>
    %362 = arith.mulf %360, %361 : vector<4x4xf32>
    %c0_103 = arith.constant 0 : index
    %c19 = arith.constant 19 : index
    %c0_104 = arith.constant 0 : index
    %c0_105 = arith.constant 0 : index
    %363 = vector.load %arg4[%c0_103, %c19, %c0_104, %c0_105] : memref<1x21x4x4xf32, #tpu.memory_space<vmem>>, vector<1x1x4x4xf32>
    %364 = vector.shape_cast %363 : vector<1x1x4x4xf32> to vector<4x4xf32>
    %365 = vector.shape_cast %362 : vector<4x4xf32> to vector<1x1x4x4xf32>
    tpu.vector_store %arg4[%c0_103, %c19, %c0_104, %c0_105], %365 {strides = array<i32>} : memref<1x21x4x4xf32, #tpu.memory_space<vmem>>, vector<1x1x4x4xf32>,
    %366 = vector.extract_strided_slice %5 {offsets = [0, 0, 40], sizes = [4, 6, 6], strides = [1, 1, 1]} : vector<4x6x46xf32> to vector<4x6x6xf32>
    %367 = arith.mulf %1, %366 : vector<4x6x6xf32>
    %cst_106 = arith.constant dense<0.000000e+00> : vector<6x6xf32>
    %368 = vector.multi_reduction <add>, %367, %cst_106 [0] : vector<4x6x6xf32> to vector<6x6xf32>
    %369 = vector.extract_strided_slice %368 {offsets = [0, 0], sizes = [6, 4], strides = [1, 1]} : vector<6x6xf32> to vector<6x4xf32>
    %370 = vector.extract_strided_slice %368 {offsets = [0, 1], sizes = [6, 4], strides = [1, 1]} : vector<6x6xf32> to vector<6x4xf32>
    %371 = arith.addf %369, %370 : vector<6x4xf32>
    %372 = vector.extract_strided_slice %368 {offsets = [0, 2], sizes = [6, 4], strides = [1, 1]} : vector<6x6xf32> to vector<6x4xf32>
    %373 = arith.addf %371, %372 : vector<6x4xf32>
    %374 = vector.extract_strided_slice %373 {offsets = [0, 0], sizes = [4, 4], strides = [1, 1]} : vector<6x4xf32> to vector<4x4xf32>
    %375 = vector.extract_strided_slice %373 {offsets = [1, 0], sizes = [4, 4], strides = [1, 1]} : vector<6x4xf32> to vector<4x4xf32>
    %376 = arith.addf %374, %375 : vector<4x4xf32>
    %377 = vector.extract_strided_slice %373 {offsets = [2, 0], sizes = [4, 4], strides = [1, 1]} : vector<6x4xf32> to vector<4x4xf32>
    %378 = arith.addf %376, %377 : vector<4x4xf32>
    %cst_107 = arith.constant 0.027777778 : f32
    %379 = vector.broadcast %cst_107 : f32 to vector<4x4xf32>
    %380 = arith.mulf %378, %379 : vector<4x4xf32>
    %c0_108 = arith.constant 0 : index
    %c20 = arith.constant 20 : index
    %c0_109 = arith.constant 0 : index
    %c0_110 = arith.constant 0 : index
    %381 = vector.load %arg4[%c0_108, %c20, %c0_109, %c0_110] : memref<1x21x4x4xf32, #tpu.memory_space<vmem>>, vector<1x1x4x4xf32>
    %382 = vector.shape_cast %381 : vector<1x1x4x4xf32> to vector<4x4xf32>
    %383 = vector.shape_cast %380 : vector<4x4xf32> to vector<1x1x4x4xf32>
    tpu.vector_store %arg4[%c0_108, %c20, %c0_109, %c0_110], %383 {strides = array<i32>} : memref<1x21x4x4xf32, #tpu.memory_space<vmem>>, vector<1x1x4x4xf32>,
    return
  }
  func.func @transform_0(%arg0: i32, %arg1: i32) -> (i32, i32, i32, i32) {
    %c0_i32 = arith.constant 0 : i32
    %c0_i32_0 = arith.constant 0 : i32
    %c0_i32_1 = arith.constant 0 : i32
    %c0_i32_2 = arith.constant 0 : i32
    return %arg0, %c0_i32, %c0_i32_0, %c0_i32_1 : i32, i32, i32, i32
  }
  func.func @transform_1(%arg0: i32, %arg1: i32) -> (i32, i32, i32, i32) {
    %c0_i32 = arith.constant 0 : i32
    %c0_i32_0 = arith.constant 0 : i32
    %c0_i32_1 = arith.constant 0 : i32
    %c0_i32_2 = arith.constant 0 : i32
    return %arg0, %c0_i32, %c0_i32_0, %c0_i32_1 : i32, i32, i32, i32
  }
  func.func @transform_2(%arg0: i32, %arg1: i32) -> (i32, i32, i32, i32) {
    %c0_i32 = arith.constant 0 : i32
    %c0_i32_0 = arith.constant 0 : i32
    %c0_i32_1 = arith.constant 0 : i32
    return %arg0, %arg1, %c0_i32, %c0_i32_0 : i32, i32, i32, i32
  }
}

</mosaic_0001>

<llo_original>
// kernel: tpu_custom_call.1
$region0: #{tpu_custom_call.1}
  #allocation0 [shape = 'u32[]', space=smem, size = 0x4, offset = 0x4, fixed_abs, tag = 'smem constant byte address 0x4 - core index']
  #allocation1 [shape = 'u32[144,128]{1,0:T(1,128)}', space=vmem, size = 0x12000, scoped, tag = 'internal scratch']
  %s0 = inlined_call_operand.vmem [shape: f32[2,4,6,6], index: 0, kind: input, shape index: {}]
  %s1 = inlined_call_operand.vmem [shape: f32[2,4,46,46], index: 1, kind: input, shape index: {}]
  %s2 = inlined_call_operand.vmem [shape: f32[2,441,4,4], index: 2, kind: output, shape index: {}]
  %s3 = sld [smem:[#allocation0]]
  $region41: #{tpu_custom_call.1} parent=0
    _
  %s5 = ssub.s32 1, %s3
  %s6 = scalar_select 0, %s5, %s3
  loop: start=0, step=1, limit=44
  $region2: #{tpu_custom_call.1} parent=0 // loop_pre_header
    _
  $region3: #{tpu_custom_call.1} parent=0 // loop_header
    %s8 = sphi 0, %s12
    %p9 = scmp.ge.s32.totalorder %s8, 44
    %s15 = sphi 0, %s27
    %s16 = sphi 0, %s23
    %s17 = sphi 0, %s15
    %s18 = sphi 0, %s16
    %s19 = sphi 0, %s17
    %s20 = sphi 0, %s18
    %s30 = sphi 0, %s32
    %s33 = sphi 0, %s30
    %s34 = sphi 0, %s33
    %s50 = sphi 0, %s34
    %s56 = sphi 0, %s58
    %s59 = sphi 0, %s56
    %s60 = sphi 0, %s59
    %s76 = sphi 0, %s60
    %s84 = sphi 0, %s86
    %s87 = sphi 0, %s84
    %s88 = sphi 0, %s87
    %s104 = sphi 0, %s88
  $region4: #{tpu_custom_call.1} parent=0 // loop_header_branch
    %11 = sbr.rel (%p9) target = $region8
  $region5: #{tpu_custom_call.1} parent=0 // loop_body
    %s13 = ssub.s32 %s8, 1
    %s14 = ssub.s32 %s8, 2
    %s21 = sadd.s32 1, %s16
    %p22 = scmp.ge.s32.totalorder %s21, 21
    %s23 = scalar_select %p22, 0, %s21
    %s24 = sadd.s32 1, %s15
    %s25 = scalar_select %p22, %s24, %s15
    %p26 = scmp.ge.s32.totalorder %s25, 2
    %s27 = scalar_select %p26, 0, %s25
    %s28 = ssub.s32 %s15, %s27
    %p29 = scmp.eq.s32.totalorder %s28, 0
    %s31 = sadd.s32 %s30, 1
    %s32 = scalar_select %p29, %s30, %s31
    %p35 = pneg %p29
    %p36 = scmp.eq.s32.totalorder %s8, 41
    %p37 = por %p35, %p36
    %p38 = scmp.ne.s32.totalorder %s30, %s33
    %p39 = scmp.eq.s32.totalorder %s8, 0
    %p40 = por %p38, %p39
    %p41 = scmp.ne.s32.totalorder %s30, %s33
    %p42 = scmp.eq.s32.totalorder %s13, 41
    %p43 = por %p41, %p42
    %p44 = scmp.ne.s32.totalorder %s33, %s34
    %p45 = scmp.eq.s32.totalorder %s13, 0
    %p46 = por %p44, %p45
    %p47 = scmp.ne.s32.totalorder %s33, %s34
    %p48 = scmp.eq.s32.totalorder %s14, 41
    %p49 = por %p47, %p48
    %p51 = scmp.ne.s32.totalorder %s34, %s50
    %p52 = scmp.eq.s32.totalorder %s14, 0
    %p53 = por %p51, %p52
    %s54 = ssub.s32 %s15, %s27
    %p55 = scmp.eq.s32.totalorder %s54, 0
    %s57 = sadd.s32 %s56, 1
    %s58 = scalar_select %p55, %s56, %s57
    %p61 = pneg %p55
    %p62 = scmp.eq.s32.totalorder %s8, 41
    %p63 = por %p61, %p62
    %p64 = scmp.ne.s32.totalorder %s56, %s59
    %p65 = scmp.eq.s32.totalorder %s8, 0
    %p66 = por %p64, %p65
    %p67 = scmp.ne.s32.totalorder %s56, %s59
    %p68 = scmp.eq.s32.totalorder %s13, 41
    %p69 = por %p67, %p68
    %p70 = scmp.ne.s32.totalorder %s59, %s60
    %p71 = scmp.eq.s32.totalorder %s13, 0
    %p72 = por %p70, %p71
    %p73 = scmp.ne.s32.totalorder %s59, %s60
    %p74 = scmp.eq.s32.totalorder %s14, 41
    %p75 = por %p73, %p74
    %p77 = scmp.ne.s32.totalorder %s60, %s76
    %p78 = scmp.eq.s32.totalorder %s14, 0
    %p79 = por %p77, %p78
    %s80 = ssub.s32 %s15, %s27
    %s81 = ssub.s32 %s16, %s23
    %s82 = sor.u32 %s80, %s81
    %p83 = scmp.eq.s32.totalorder %s82, 0
    %s85 = sadd.s32 %s84, 1
    %s86 = scalar_select %p83, %s84, %s85
    %p89 = pneg %p83
    %p90 = scmp.eq.s32.totalorder %s8, 41
    %p91 = por %p89, %p90
    %p92 = scmp.ne.s32.totalorder %s84, %s87
    %p93 = scmp.eq.s32.totalorder %s8, 0
    %p94 = por %p92, %p93
    %p95 = scmp.ne.s32.totalorder %s84, %s87
    %p96 = scmp.eq.s32.totalorder %s13, 41
    %p97 = por %p95, %p96
    %p98 = scmp.ne.s32.totalorder %s87, %s88
    %p99 = scmp.eq.s32.totalorder %s13, 0
    %p100 = por %p98, %p99
    %p101 = scmp.ne.s32.totalorder %s87, %s88
    %p102 = scmp.eq.s32.totalorder %s14, 41
    %p103 = por %p101, %p102
    %p105 = scmp.ne.s32.totalorder %s88, %s104
    %p106 = scmp.eq.s32.totalorder %s14, 0
    %p107 = por %p105, %p106
    %p108 = scmp.le.s32.totalorder 1, %s8
    %p109 = scmp.lt.s32.totalorder %s8, 43
    %p110 = pnand %p108, %p109
    %p111 = pneg %p110
    // Predicated region
    $region9: #{tpu_custom_call.1} parent=5 // pred_check
      _
    $region10: #{tpu_custom_call.1} parent=5 // pred_check_branch
      %113 = sbr.rel (%p110) target = $region12
    $region11: #{tpu_custom_call.1} parent=5 // pred_region
      %s114 = ssub.s32 %s8, 1
    $region12: #{tpu_custom_call.1} parent=5 // pred_fallthru
      _
    %p115 = scmp.lt.s32.totalorder %s8, 42
    // Predicated region
    $region13: #{tpu_custom_call.1} parent=5 // pred_check
      %p116 = pneg %p115
    $region14: #{tpu_custom_call.1} parent=5 // pred_check_branch
      %118 = sbr.rel (%p116) target = $region16
    $region15: #{tpu_custom_call.1} parent=5 // pred_region
      // Predicated region
      $region17: #{tpu_custom_call.1} parent=15 // pred_check
        %p119 = pneg %p40
      $region18: #{tpu_custom_call.1} parent=15 // pred_check_branch
        %121 = sbr.rel (%p119) target = $region20
      $region19: #{tpu_custom_call.1} parent=15 // pred_region
        %p122 = scmp.lt.s32.totalorder %s15, 1
        %s123 = scalar_select %p122, %s15, 1
        %s124 = smul.addr %s123, 4
        %s125 = smul.addr %s124, 8
        %s126 = scalar_lea.vmem %s0, %s125
      $region20: #{tpu_custom_call.1} parent=15 // pred_fallthru
        _
      // Predicated region
      $region21: #{tpu_custom_call.1} parent=15 // pred_check
        %p127 = pneg %p66
      $region22: #{tpu_custom_call.1} parent=15 // pred_check_branch
        %129 = sbr.rel (%p127) target = $region24
      $region23: #{tpu_custom_call.1} parent=15 // pred_region
        %p130 = scmp.lt.s32.totalorder %s15, 1
        %s131 = scalar_select %p130, %s15, 1
        %s132 = smul.addr %s131, 24
        %s133 = smul.addr %s132, 8
        %s134 = scalar_lea.vmem %s1, %s133
      $region24: #{tpu_custom_call.1} parent=15 // pred_fallthru
        _
    $region16: #{tpu_custom_call.1} parent=5 // pred_fallthru
      _
    %p135 = scmp.le.s32.totalorder 1, %s8
    %p136 = scmp.lt.s32.totalorder %s8, 43
    %p137 = pnand %p135, %p136
    %p138 = pneg %p137
    // Predicated region
    $region25: #{tpu_custom_call.1} parent=5 // pred_check
      _
    $region26: #{tpu_custom_call.1} parent=5 // pred_check_branch
      %140 = sbr.rel (%p137) target = $region28
    $region27: #{tpu_custom_call.1} parent=5 // pred_region
      %s141 = ssub.s32 %s8, 1
      %p142 = scmp.lt.s32.totalorder %s17, 1
      %s143 = scalar_select %p142, %s17, 1
      %s144 = smul.addr %s143, 4
      %s145 = smul.addr %s144, 8
      %s146 = scalar_lea.vmem %s0, %s145
      %p147 = pneg %p46
      %p148 = pneg %p43
      %p149 = scmp.lt.s32.totalorder %s17, 1
      %s150 = scalar_select %p149, %s17, 1
      %s151 = smul.addr %s150, 24
      %s152 = smul.addr %s151, 8
      %s153 = scalar_lea.vmem %s1, %s152
      %p154 = pneg %p72
      %p155 = pneg %p69
      %p156 = pneg %p100
      %p157 = pneg %p97
      %s158 = smul.u32 21, %s18
      %p159 = scmp.lt.s32.totalorder %s17, 1
      %s160 = scalar_select %p159, %s17, 1
      %p161 = scmp.lt.s32.totalorder %s158, 440
      %s162 = scalar_select %p161, %s158, 440
      %s163 = smul.addr %s160, 441
      %s164 = sadd.s32 %s162, %s163
      %s165 = smul.addr %s164, 4
      %s166 = scalar_lea.vmem %s2, %s165
      %p167 = scmp.lt.s32.totalorder %s17, 1
      %s168 = scalar_select %p167, %s17, 1
      %s169 = smul.addr %s168, 4
      %s170 = smul.addr %s169, 8
      %s171 = scalar_lea.vmem %s0, %s170
      %p172 = scmp.lt.s32.totalorder %s17, 1
      %s173 = scalar_select %p172, %s17, 1
      %s174 = smul.addr %s173, 24
      %s175 = smul.addr %s174, 8
      %s176 = scalar_lea.vmem %s1, %s175
      %s177 = smul.u32 21, %s18
      %p178 = scmp.lt.s32.totalorder %s17, 1
      %s179 = scalar_select %p178, %s17, 1
      %p180 = scmp.lt.s32.totalorder %s177, 440
      %s181 = scalar_select %p180, %s177, 440
      %s182 = smul.addr %s179, 441
      %s183 = sadd.s32 %s181, %s182
      %s184 = smul.addr %s183, 4
      %s185 = scalar_lea.vmem %s2, %s184
      %s186 = smul.u32 21, %s18
      %v187 = vld [vmem:[%s171] sm:$0x3f]
      %v188 = vld [vmem:[%s171 + $0x8] sm:$0x3f]
      %v189 = vld [vmem:[%s171 + $0x10] sm:$0x3f]
      %v190 = vld [vmem:[%s171 + $0x18] sm:$0x3f]
      %s191 = smul.u32 %s18, 2
      %s192 = scalar_lea.vmem %s176, %s191
      %v193 = vld [vmem:[%s192] sm:$0x3f]
      %v194 = vld [vmem:[%s192 + $0x30] sm:$0x3f]
      %v195 = vld [vmem:[%s192 + $0x60] sm:$0x3f]
      %v196 = vld [vmem:[%s192 + $0x90] sm:$0x3f]
      %v197 = vmul.f32 %v187, %v193
      %v198 = vmul.f32 %v188, %v194
      %v199 = vmul.f32 %v189, %v195
      %v200 = vmul.f32 %v190, %v196
      %vm201 = vcmask 46080
      %v202 = vsel %vm201, %v197, 0.0
      %v203 = vsel %vm201, %v198, 0.0
      %v204 = vadd.f32 %v202, %v203
      %v205 = vsel %vm201, %v199, 0.0
      %v206 = vadd.f32 %v204, %v205
      %v207 = vsel %vm201, %v200, 0.0
      %v208 = vadd.f32 %v206, %v207
      %210 = vrot.lane.b32.xlu0 %v208, 127
      %v211 = vpop.permute.xlu0 %210
      %v213 = vadd.f32 %v208, %v211
      %214 = vrot.lane.b32.xlu0 %v208, 126
      %v215 = vpop.permute.xlu0 %214
      %v217 = vadd.f32 %v213, %v215
      %v219 = vrot.slane %v217, 1
      %v221 = vadd.f32 %v217, %v219
      %v222 = vrot.slane %v217, 2
      %v224 = vadd.f32 %v221, %v222
      %v225 = vmul.f32 %v224, 0.027777778
      %vm226 = vcmask 27648
      %227 = vst.msk [vmem:[%s185] sm:$0xf] %vm226, %v225
      %232 = vrot.lane.b32.xlu0 %v193, 126
      %v233 = vpop.permute.xlu0 %232
      %234 = vrot.lane.b32.xlu0 %v194, 126
      %v235 = vpop.permute.xlu0 %234
      %236 = vrot.lane.b32.xlu0 %v195, 126
      %v237 = vpop.permute.xlu0 %236
      %238 = vrot.lane.b32.xlu0 %v196, 126
      %v239 = vpop.permute.xlu0 %238
      %v244 = vmul.f32 %v187, %v233
      %v245 = vmul.f32 %v188, %v235
      %v246 = vmul.f32 %v189, %v237
      %v247 = vmul.f32 %v190, %v239
      %v248 = vsel %vm201, %v244, 0.0
      %v249 = vsel %vm201, %v245, 0.0
      %v250 = vadd.f32 %v248, %v249
      %v251 = vsel %vm201, %v246, 0.0
      %v252 = vadd.f32 %v250, %v251
      %v253 = vsel %vm201, %v247, 0.0
      %v254 = vadd.f32 %v252, %v253
      %256 = vrot.lane.b32.xlu0 %v254, 127
      %v257 = vpop.permute.xlu0 %256
      %v259 = vadd.f32 %v254, %v257
      %260 = vrot.lane.b32.xlu0 %v254, 126
      %v261 = vpop.permute.xlu0 %260
      %v263 = vadd.f32 %v259, %v261
      %v265 = vrot.slane %v263, 1
      %v267 = vadd.f32 %v263, %v265
      %v268 = vrot.slane %v263, 2
      %v270 = vadd.f32 %v267, %v268
      %v271 = vmul.f32 %v270, 0.027777778
      %s272 = scalar_lea.vmem %s185, 4
      %273 = vst.msk [vmem:[%s272] sm:$0xf] %vm226, %v271
      %274 = vrot.lane.b32.xlu0 %v193, 124
      %v275 = vpop.permute.xlu0 %274
      %276 = vrot.lane.b32.xlu0 %v194, 124
      %v277 = vpop.permute.xlu0 %276
      %278 = vrot.lane.b32.xlu0 %v195, 124
      %v279 = vpop.permute.xlu0 %278
      %280 = vrot.lane.b32.xlu0 %v196, 124
      %v281 = vpop.permute.xlu0 %280
      %v286 = vmul.f32 %v187, %v275
      %v287 = vmul.f32 %v188, %v277
      %v288 = vmul.f32 %v189, %v279
      %v289 = vmul.f32 %v190, %v281
      %v290 = vsel %vm201, %v286, 0.0
      %v291 = vsel %vm201, %v287, 0.0
      %v292 = vadd.f32 %v290, %v291
      %v293 = vsel %vm201, %v288, 0.0
      %v294 = vadd.f32 %v292, %v293
      %v295 = vsel %vm201, %v289, 0.0
      %v296 = vadd.f32 %v294, %v295
      %298 = vrot.lane.b32.xlu0 %v296, 127
      %v299 = vpop.permute.xlu0 %298
      %v301 = vadd.f32 %v296, %v299
      %302 = vrot.lane.b32.xlu0 %v296, 126
      %v303 = vpop.permute.xlu0 %302
      %v305 = vadd.f32 %v301, %v303
      %v307 = vrot.slane %v305, 1
      %v309 = vadd.f32 %v305, %v307
      %v310 = vrot.slane %v305, 2
      %v312 = vadd.f32 %v309, %v310
      %v313 = vmul.f32 %v312, 0.027777778
      %s314 = scalar_lea.vmem %s185, 8
      %315 = vst.msk [vmem:[%s314] sm:$0xf] %vm226, %v313
      %316 = vrot.lane.b32.xlu0 %v193, 122
      %v317 = vpop.permute.xlu0 %316
      %318 = vrot.lane.b32.xlu0 %v194, 122
      %v319 = vpop.permute.xlu0 %318
      %320 = vrot.lane.b32.xlu0 %v195, 122
      %v321 = vpop.permute.xlu0 %320
      %322 = vrot.lane.b32.xlu0 %v196, 122
      %v323 = vpop.permute.xlu0 %322
      %v328 = vmul.f32 %v187, %v317
      %v329 = vmul.f32 %v188, %v319
      %v330 = vmul.f32 %v189, %v321
      %v331 = vmul.f32 %v190, %v323
      %v332 = vsel %vm201, %v328, 0.0
      %v333 = vsel %vm201, %v329, 0.0
      %v334 = vadd.f32 %v332, %v333
      %v335 = vsel %vm201, %v330, 0.0
      %v336 = vadd.f32 %v334, %v335
      %v337 = vsel %vm201, %v331, 0.0
      %v338 = vadd.f32 %v336, %v337
      %340 = vrot.lane.b32.xlu0 %v338, 127
      %v341 = vpop.permute.xlu0 %340
      %v343 = vadd.f32 %v338, %v341
      %344 = vrot.lane.b32.xlu0 %v338, 126
      %v345 = vpop.permute.xlu0 %344
      %v347 = vadd.f32 %v343, %v345
      %v349 = vrot.slane %v347, 1
      %v351 = vadd.f32 %v347, %v349
      %v352 = vrot.slane %v347, 2
      %v354 = vadd.f32 %v351, %v352
      %v355 = vmul.f32 %v354, 0.027777778
      %s356 = scalar_lea.vmem %s185, 12
      %357 = vst.msk [vmem:[%s356] sm:$0xf] %vm226, %v355
      %358 = vrot.lane.b32.xlu0 %v193, 120
      %v359 = vpop.permute.xlu0 %358
      %360 = vrot.lane.b32.xlu0 %v194, 120
      %v361 = vpop.permute.xlu0 %360
      %362 = vrot.lane.b32.xlu0 %v195, 120
      %v363 = vpop.permute.xlu0 %362
      %364 = vrot.lane.b32.xlu0 %v196, 120
      %v365 = vpop.permute.xlu0 %364
      %v370 = vmul.f32 %v187, %v359
      %v371 = vmul.f32 %v188, %v361
      %v372 = vmul.f32 %v189, %v363
      %v373 = vmul.f32 %v190, %v365
      %v374 = vsel %vm201, %v370, 0.0
      %v375 = vsel %vm201, %v371, 0.0
      %v376 = vadd.f32 %v374, %v375
      %v377 = vsel %vm201, %v372, 0.0
      %v378 = vadd.f32 %v376, %v377
      %v379 = vsel %vm201, %v373, 0.0
      %v380 = vadd.f32 %v378, %v379
      %382 = vrot.lane.b32.xlu0 %v380, 127
      %v383 = vpop.permute.xlu0 %382
      %v385 = vadd.f32 %v380, %v383
      %386 = vrot.lane.b32.xlu0 %v380, 126
      %v387 = vpop.permute.xlu0 %386
      %v389 = vadd.f32 %v385, %v387
      %v391 = vrot.slane %v389, 1
      %v393 = vadd.f32 %v389, %v391
      %v394 = vrot.slane %v389, 2
      %v396 = vadd.f32 %v393, %v394
      %v397 = vmul.f32 %v396, 0.027777778
      %s398 = scalar_lea.vmem %s185, 16
      %399 = vst.msk [vmem:[%s398] sm:$0xf] %vm226, %v397
      %400 = vrot.lane.b32.xlu0 %v193, 118
      %v401 = vpop.permute.xlu0 %400
      %402 = vrot.lane.b32.xlu0 %v194, 118
      %v403 = vpop.permute.xlu0 %402
      %404 = vrot.lane.b32.xlu0 %v195, 118
      %v405 = vpop.permute.xlu0 %404
      %406 = vrot.lane.b32.xlu0 %v196, 118
      %v407 = vpop.permute.xlu0 %406
      %v412 = vmul.f32 %v187, %v401
      %v413 = vmul.f32 %v188, %v403
      %v414 = vmul.f32 %v189, %v405
      %v415 = vmul.f32 %v190, %v407
      %v416 = vsel %vm201, %v412, 0.0
      %v417 = vsel %vm201, %v413, 0.0
      %v418 = vadd.f32 %v416, %v417
      %v419 = vsel %vm201, %v414, 0.0
      %v420 = vadd.f32 %v418, %v419
      %v421 = vsel %vm201, %v415, 0.0
      %v422 = vadd.f32 %v420, %v421
      %424 = vrot.lane.b32.xlu0 %v422, 127
      %v425 = vpop.permute.xlu0 %424
      %v427 = vadd.f32 %v422, %v425
      %428 = vrot.lane.b32.xlu0 %v422, 126
      %v429 = vpop.permute.xlu0 %428
      %v431 = vadd.f32 %v427, %v429
      %v433 = vrot.slane %v431, 1
      %v435 = vadd.f32 %v431, %v433
      %v436 = vrot.slane %v431, 2
      %v438 = vadd.f32 %v435, %v436
      %v439 = vmul.f32 %v438, 0.027777778
      %s440 = scalar_lea.vmem %s185, 20
      %441 = vst.msk [vmem:[%s440] sm:$0xf] %vm226, %v439
      %442 = vrot.lane.b32.xlu0 %v193, 116
      %v443 = vpop.permute.xlu0 %442
      %444 = vrot.lane.b32.xlu0 %v194, 116
      %v445 = vpop.permute.xlu0 %444
      %446 = vrot.lane.b32.xlu0 %v195, 116
      %v447 = vpop.permute.xlu0 %446
      %448 = vrot.lane.b32.xlu0 %v196, 116
      %v449 = vpop.permute.xlu0 %448
      %v454 = vmul.f32 %v187, %v443
      %v455 = vmul.f32 %v188, %v445
      %v456 = vmul.f32 %v189, %v447
      %v457 = vmul.f32 %v190, %v449
      %v458 = vsel %vm201, %v454, 0.0
      %v459 = vsel %vm201, %v455, 0.0
      %v460 = vadd.f32 %v458, %v459
      %v461 = vsel %vm201, %v456, 0.0
      %v462 = vadd.f32 %v460, %v461
      %v463 = vsel %vm201, %v457, 0.0
      %v464 = vadd.f32 %v462, %v463
      %466 = vrot.lane.b32.xlu0 %v464, 127
      %v467 = vpop.permute.xlu0 %466
      %v469 = vadd.f32 %v464, %v467
      %470 = vrot.lane.b32.xlu0 %v464, 126
      %v471 = vpop.permute.xlu0 %470
      %v473 = vadd.f32 %v469, %v471
      %v475 = vrot.slane %v473, 1
      %v477 = vadd.f32 %v473, %v475
      %v478 = vrot.slane %v473, 2
      %v480 = vadd.f32 %v477, %v478
      %v481 = vmul.f32 %v480, 0.027777778
      %s482 = scalar_lea.vmem %s185, 24
      %483 = vst.msk [vmem:[%s482] sm:$0xf] %vm226, %v481
      %484 = vrot.lane.b32.xlu0 %v193, 114
      %v485 = vpop.permute.xlu0 %484
      %486 = vrot.lane.b32.xlu0 %v194, 114
      %v487 = vpop.permute.xlu0 %486
      %488 = vrot.lane.b32.xlu0 %v195, 114
      %v489 = vpop.permute.xlu0 %488
      %490 = vrot.lane.b32.xlu0 %v196, 114
      %v491 = vpop.permute.xlu0 %490
      %v496 = vmul.f32 %v187, %v485
      %v497 = vmul.f32 %v188, %v487
      %v498 = vmul.f32 %v189, %v489
      %v499 = vmul.f32 %v190, %v491
      %v500 = vsel %vm201, %v496, 0.0
      %v501 = vsel %vm201, %v497, 0.0
      %v502 = vadd.f32 %v500, %v501
      %v503 = vsel %vm201, %v498, 0.0
      %v504 = vadd.f32 %v502, %v503
      %v505 = vsel %vm201, %v499, 0.0
      %v506 = vadd.f32 %v504, %v505
      %508 = vrot.lane.b32.xlu0 %v506, 127
      %v509 = vpop.permute.xlu0 %508
      %v511 = vadd.f32 %v506, %v509
      %512 = vrot.lane.b32.xlu0 %v506, 126
      %v513 = vpop.permute.xlu0 %512
      %v515 = vadd.f32 %v511, %v513
      %v517 = vrot.slane %v515, 1
      %v519 = vadd.f32 %v515, %v517
      %v520 = vrot.slane %v515, 2
      %v522 = vadd.f32 %v519, %v520
      %v523 = vmul.f32 %v522, 0.027777778
      %s524 = scalar_lea.vmem %s185, 28
      %525 = vst.msk [vmem:[%s524] sm:$0xf] %vm226, %v523
      %526 = vrot.lane.b32.xlu0 %v193, 112
      %v527 = vpop.permute.xlu0 %526
      %528 = vrot.lane.b32.xlu0 %v194, 112
      %v529 = vpop.permute.xlu0 %528
      %530 = vrot.lane.b32.xlu0 %v195, 112
      %v531 = vpop.permute.xlu0 %530
      %532 = vrot.lane.b32.xlu0 %v196, 112
      %v533 = vpop.permute.xlu0 %532
      %v538 = vmul.f32 %v187, %v527
      %v539 = vmul.f32 %v188, %v529
      %v540 = vmul.f32 %v189, %v531
      %v541 = vmul.f32 %v190, %v533
      %v542 = vsel %vm201, %v538, 0.0
      %v543 = vsel %vm201, %v539, 0.0
      %v544 = vadd.f32 %v542, %v543
      %v545 = vsel %vm201, %v540, 0.0
      %v546 = vadd.f32 %v544, %v545
      %v547 = vsel %vm201, %v541, 0.0
      %v548 = vadd.f32 %v546, %v547
      %550 = vrot.lane.b32.xlu0 %v548, 127
      %v551 = vpop.permute.xlu0 %550
      %v553 = vadd.f32 %v548, %v551
      %554 = vrot.lane.b32.xlu0 %v548, 126
      %v555 = vpop.permute.xlu0 %554
      %v557 = vadd.f32 %v553, %v555
      %v559 = vrot.slane %v557, 1
      %v561 = vadd.f32 %v557, %v559
      %v562 = vrot.slane %v557, 2
      %v564 = vadd.f32 %v561, %v562
      %v565 = vmul.f32 %v564, 0.027777778
      %s566 = scalar_lea.vmem %s185, 32
      %567 = vst.msk [vmem:[%s566] sm:$0xf] %vm226, %v565
      %568 = vrot.lane.b32.xlu0 %v193, 110
      %v569 = vpop.permute.xlu0 %568
      %570 = vrot.lane.b32.xlu0 %v194, 110
      %v571 = vpop.permute.xlu0 %570
      %572 = vrot.lane.b32.xlu0 %v195, 110
      %v573 = vpop.permute.xlu0 %572
      %574 = vrot.lane.b32.xlu0 %v196, 110
      %v575 = vpop.permute.xlu0 %574
      %v580 = vmul.f32 %v187, %v569
      %v581 = vmul.f32 %v188, %v571
      %v582 = vmul.f32 %v189, %v573
      %v583 = vmul.f32 %v190, %v575
      %v584 = vsel %vm201, %v580, 0.0
      %v585 = vsel %vm201, %v581, 0.0
      %v586 = vadd.f32 %v584, %v585
      %v587 = vsel %vm201, %v582, 0.0
      %v588 = vadd.f32 %v586, %v587
      %v589 = vsel %vm201, %v583, 0.0
      %v590 = vadd.f32 %v588, %v589
      %592 = vrot.lane.b32.xlu0 %v590, 127
      %v593 = vpop.permute.xlu0 %592
      %v595 = vadd.f32 %v590, %v593
      %596 = vrot.lane.b32.xlu0 %v590, 126
      %v597 = vpop.permute.xlu0 %596
      %v599 = vadd.f32 %v595, %v597
      %v601 = vrot.slane %v599, 1
      %v603 = vadd.f32 %v599, %v601
      %v604 = vrot.slane %v599, 2
      %v606 = vadd.f32 %v603, %v604
      %v607 = vmul.f32 %v606, 0.027777778
      %s608 = scalar_lea.vmem %s185, 36
      %609 = vst.msk [vmem:[%s608] sm:$0xf] %vm226, %v607
      %610 = vrot.lane.b32.xlu0 %v193, 108
      %v611 = vpop.permute.xlu0 %610
      %612 = vrot.lane.b32.xlu0 %v194, 108
      %v613 = vpop.permute.xlu0 %612
      %614 = vrot.lane.b32.xlu0 %v195, 108
      %v615 = vpop.permute.xlu0 %614
      %616 = vrot.lane.b32.xlu0 %v196, 108
      %v617 = vpop.permute.xlu0 %616
      %v622 = vmul.f32 %v187, %v611
      %v623 = vmul.f32 %v188, %v613
      %v624 = vmul.f32 %v189, %v615
      %v625 = vmul.f32 %v190, %v617
      %v626 = vsel %vm201, %v622, 0.0
      %v627 = vsel %vm201, %v623, 0.0
      %v628 = vadd.f32 %v626, %v627
      %v629 = vsel %vm201, %v624, 0.0
      %v630 = vadd.f32 %v628, %v629
      %v631 = vsel %vm201, %v625, 0.0
      %v632 = vadd.f32 %v630, %v631
      %634 = vrot.lane.b32.xlu0 %v632, 127
      %v635 = vpop.permute.xlu0 %634
      %v637 = vadd.f32 %v632, %v635
      %638 = vrot.lane.b32.xlu0 %v632, 126
      %v639 = vpop.permute.xlu0 %638
      %v641 = vadd.f32 %v637, %v639
      %v643 = vrot.slane %v641, 1
      %v645 = vadd.f32 %v641, %v643
      %v646 = vrot.slane %v641, 2
      %v648 = vadd.f32 %v645, %v646
      %v649 = vmul.f32 %v648, 0.027777778
      %s650 = scalar_lea.vmem %s185, 40
      %651 = vst.msk [vmem:[%s650] sm:$0xf] %vm226, %v649
      %652 = vrot.lane.b32.xlu0 %v193, 106
      %v653 = vpop.permute.xlu0 %652
      %654 = vrot.lane.b32.xlu0 %v194, 106
      %v655 = vpop.permute.xlu0 %654
      %656 = vrot.lane.b32.xlu0 %v195, 106
      %v657 = vpop.permute.xlu0 %656
      %658 = vrot.lane.b32.xlu0 %v196, 106
      %v659 = vpop.permute.xlu0 %658
      %v664 = vmul.f32 %v187, %v653
      %v665 = vmul.f32 %v188, %v655
      %v666 = vmul.f32 %v189, %v657
      %v667 = vmul.f32 %v190, %v659
      %v668 = vsel %vm201, %v664, 0.0
      %v669 = vsel %vm201, %v665, 0.0
      %v670 = vadd.f32 %v668, %v669
      %v671 = vsel %vm201, %v666, 0.0
      %v672 = vadd.f32 %v670, %v671
      %v673 = vsel %vm201, %v667, 0.0
      %v674 = vadd.f32 %v672, %v673
      %676 = vrot.lane.b32.xlu0 %v674, 127
      %v677 = vpop.permute.xlu0 %676
      %v679 = vadd.f32 %v674, %v677
      %680 = vrot.lane.b32.xlu0 %v674, 126
      %v681 = vpop.permute.xlu0 %680
      %v683 = vadd.f32 %v679, %v681
      %v685 = vrot.slane %v683, 1
      %v687 = vadd.f32 %v683, %v685
      %v688 = vrot.slane %v683, 2
      %v690 = vadd.f32 %v687, %v688
      %v691 = vmul.f32 %v690, 0.027777778
      %s692 = scalar_lea.vmem %s185, 44
      %693 = vst.msk [vmem:[%s692] sm:$0xf] %vm226, %v691
      %694 = vrot.lane.b32.xlu0 %v193, 104
      %v695 = vpop.permute.xlu0 %694
      %696 = vrot.lane.b32.xlu0 %v194, 104
      %v697 = vpop.permute.xlu0 %696
      %698 = vrot.lane.b32.xlu0 %v195, 104
      %v699 = vpop.permute.xlu0 %698
      %700 = vrot.lane.b32.xlu0 %v196, 104
      %v701 = vpop.permute.xlu0 %700
      %v706 = vmul.f32 %v187, %v695
      %v707 = vmul.f32 %v188, %v697
      %v708 = vmul.f32 %v189, %v699
      %v709 = vmul.f32 %v190, %v701
      %v710 = vsel %vm201, %v706, 0.0
      %v711 = vsel %vm201, %v707, 0.0
      %v712 = vadd.f32 %v710, %v711
      %v713 = vsel %vm201, %v708, 0.0
      %v714 = vadd.f32 %v712, %v713
      %v715 = vsel %vm201, %v709, 0.0
      %v716 = vadd.f32 %v714, %v715
      %718 = vrot.lane.b32.xlu0 %v716, 127
      %v719 = vpop.permute.xlu0 %718
      %v721 = vadd.f32 %v716, %v719
      %722 = vrot.lane.b32.xlu0 %v716, 126
      %v723 = vpop.permute.xlu0 %722
      %v725 = vadd.f32 %v721, %v723
      %v727 = vrot.slane %v725, 1
      %v729 = vadd.f32 %v725, %v727
      %v730 = vrot.slane %v725, 2
      %v732 = vadd.f32 %v729, %v730
      %v733 = vmul.f32 %v732, 0.027777778
      %s734 = scalar_lea.vmem %s185, 48
      %735 = vst.msk [vmem:[%s734] sm:$0xf] %vm226, %v733
      %736 = vrot.lane.b32.xlu0 %v193, 102
      %v737 = vpop.permute.xlu0 %736
      %738 = vrot.lane.b32.xlu0 %v194, 102
      %v739 = vpop.permute.xlu0 %738
      %740 = vrot.lane.b32.xlu0 %v195, 102
      %v741 = vpop.permute.xlu0 %740
      %742 = vrot.lane.b32.xlu0 %v196, 102
      %v743 = vpop.permute.xlu0 %742
      %v748 = vmul.f32 %v187, %v737
      %v749 = vmul.f32 %v188, %v739
      %v750 = vmul.f32 %v189, %v741
      %v751 = vmul.f32 %v190, %v743
      %v752 = vsel %vm201, %v748, 0.0
      %v753 = vsel %vm201, %v749, 0.0
      %v754 = vadd.f32 %v752, %v753
      %v755 = vsel %vm201, %v750, 0.0
      %v756 = vadd.f32 %v754, %v755
      %v757 = vsel %vm201, %v751, 0.0
      %v758 = vadd.f32 %v756, %v757
      %760 = vrot.lane.b32.xlu0 %v758, 127
      %v761 = vpop.permute.xlu0 %760
      %v763 = vadd.f32 %v758, %v761
      %764 = vrot.lane.b32.xlu0 %v758, 126
      %v765 = vpop.permute.xlu0 %764
      %v767 = vadd.f32 %v763, %v765
      %v769 = vrot.slane %v767, 1
      %v771 = vadd.f32 %v767, %v769
      %v772 = vrot.slane %v767, 2
      %v774 = vadd.f32 %v771, %v772
      %v775 = vmul.f32 %v774, 0.027777778
      %s776 = scalar_lea.vmem %s185, 52
      %777 = vst.msk [vmem:[%s776] sm:$0xf] %vm226, %v775
      %778 = vrot.lane.b32.xlu0 %v193, 100
      %v779 = vpop.permute.xlu0 %778
      %780 = vrot.lane.b32.xlu0 %v194, 100
      %v781 = vpop.permute.xlu0 %780
      %782 = vrot.lane.b32.xlu0 %v195, 100
      %v783 = vpop.permute.xlu0 %782
      %784 = vrot.lane.b32.xlu0 %v196, 100
      %v785 = vpop.permute.xlu0 %784
      %v790 = vmul.f32 %v187, %v779
      %v791 = vmul.f32 %v188, %v781
      %v792 = vmul.f32 %v189, %v783
      %v793 = vmul.f32 %v190, %v785
      %v794 = vsel %vm201, %v790, 0.0
      %v795 = vsel %vm201, %v791, 0.0
      %v796 = vadd.f32 %v794, %v795
      %v797 = vsel %vm201, %v792, 0.0
      %v798 = vadd.f32 %v796, %v797
      %v799 = vsel %vm201, %v793, 0.0
      %v800 = vadd.f32 %v798, %v799
      %802 = vrot.lane.b32.xlu0 %v800, 127
      %v803 = vpop.permute.xlu0 %802
      %v805 = vadd.f32 %v800, %v803
      %806 = vrot.lane.b32.xlu0 %v800, 126
      %v807 = vpop.permute.xlu0 %806
      %v809 = vadd.f32 %v805, %v807
      %v811 = vrot.slane %v809, 1
      %v813 = vadd.f32 %v809, %v811
      %v814 = vrot.slane %v809, 2
      %v816 = vadd.f32 %v813, %v814
      %v817 = vmul.f32 %v816, 0.027777778
      %s818 = scalar_lea.vmem %s185, 56
      %819 = vst.msk [vmem:[%s818] sm:$0xf] %vm226, %v817
      %820 = vrot.lane.b32.xlu0 %v193, 98
      %v821 = vpop.permute.xlu0 %820
      %822 = vrot.lane.b32.xlu0 %v194, 98
      %v823 = vpop.permute.xlu0 %822
      %824 = vrot.lane.b32.xlu0 %v195, 98
      %v825 = vpop.permute.xlu0 %824
      %826 = vrot.lane.b32.xlu0 %v196, 98
      %v827 = vpop.permute.xlu0 %826
      %v832 = vmul.f32 %v187, %v821
      %v833 = vmul.f32 %v188, %v823
      %v834 = vmul.f32 %v189, %v825
      %v835 = vmul.f32 %v190, %v827
      %v836 = vsel %vm201, %v832, 0.0
      %v837 = vsel %vm201, %v833, 0.0
      %v838 = vadd.f32 %v836, %v837
      %v839 = vsel %vm201, %v834, 0.0
      %v840 = vadd.f32 %v838, %v839
      %v841 = vsel %vm201, %v835, 0.0
      %v842 = vadd.f32 %v840, %v841
      %844 = vrot.lane.b32.xlu0 %v842, 127
      %v845 = vpop.permute.xlu0 %844
      %v847 = vadd.f32 %v842, %v845
      %848 = vrot.lane.b32.xlu0 %v842, 126
      %v849 = vpop.permute.xlu0 %848
      %v851 = vadd.f32 %v847, %v849
      %v853 = vrot.slane %v851, 1
      %v855 = vadd.f32 %v851, %v853
      %v856 = vrot.slane %v851, 2
      %v858 = vadd.f32 %v855, %v856
      %v859 = vmul.f32 %v858, 0.027777778
      %s860 = scalar_lea.vmem %s185, 60
      %861 = vst.msk [vmem:[%s860] sm:$0xf] %vm226, %v859
      %862 = vrot.lane.b32.xlu0 %v193, 96
      %v863 = vpop.permute.xlu0 %862
      %864 = vrot.lane.b32.xlu0 %v194, 96
      %v865 = vpop.permute.xlu0 %864
      %866 = vrot.lane.b32.xlu0 %v195, 96
      %v867 = vpop.permute.xlu0 %866
      %868 = vrot.lane.b32.xlu0 %v196, 96
      %v869 = vpop.permute.xlu0 %868
      %v874 = vmul.f32 %v187, %v863
      %v875 = vmul.f32 %v188, %v865
      %v876 = vmul.f32 %v189, %v867
      %v877 = vmul.f32 %v190, %v869
      %v878 = vsel %vm201, %v874, 0.0
      %v879 = vsel %vm201, %v875, 0.0
      %v880 = vadd.f32 %v878, %v879
      %v881 = vsel %vm201, %v876, 0.0
      %v882 = vadd.f32 %v880, %v881
      %v883 = vsel %vm201, %v877, 0.0
      %v884 = vadd.f32 %v882, %v883
      %886 = vrot.lane.b32.xlu0 %v884, 127
      %v887 = vpop.permute.xlu0 %886
      %v889 = vadd.f32 %v884, %v887
      %890 = vrot.lane.b32.xlu0 %v884, 126
      %v891 = vpop.permute.xlu0 %890
      %v893 = vadd.f32 %v889, %v891
      %v895 = vrot.slane %v893, 1
      %v897 = vadd.f32 %v893, %v895
      %v898 = vrot.slane %v893, 2
      %v900 = vadd.f32 %v897, %v898
      %v901 = vmul.f32 %v900, 0.027777778
      %s902 = scalar_lea.vmem %s185, 64
      %903 = vst.msk [vmem:[%s902] sm:$0xf] %vm226, %v901
      %904 = vrot.lane.b32.xlu0 %v193, 94
      %v905 = vpop.permute.xlu0 %904
      %906 = vrot.lane.b32.xlu0 %v194, 94
      %v907 = vpop.permute.xlu0 %906
      %908 = vrot.lane.b32.xlu0 %v195, 94
      %v909 = vpop.permute.xlu0 %908
      %910 = vrot.lane.b32.xlu0 %v196, 94
      %v911 = vpop.permute.xlu0 %910
      %v916 = vmul.f32 %v187, %v905
      %v917 = vmul.f32 %v188, %v907
      %v918 = vmul.f32 %v189, %v909
      %v919 = vmul.f32 %v190, %v911
      %v920 = vsel %vm201, %v916, 0.0
      %v921 = vsel %vm201, %v917, 0.0
      %v922 = vadd.f32 %v920, %v921
      %v923 = vsel %vm201, %v918, 0.0
      %v924 = vadd.f32 %v922, %v923
      %v925 = vsel %vm201, %v919, 0.0
      %v926 = vadd.f32 %v924, %v925
      %928 = vrot.lane.b32.xlu0 %v926, 127
      %v929 = vpop.permute.xlu0 %928
      %v931 = vadd.f32 %v926, %v929
      %932 = vrot.lane.b32.xlu0 %v926, 126
      %v933 = vpop.permute.xlu0 %932
      %v935 = vadd.f32 %v931, %v933
      %v937 = vrot.slane %v935, 1
      %v939 = vadd.f32 %v935, %v937
      %v940 = vrot.slane %v935, 2
      %v942 = vadd.f32 %v939, %v940
      %v943 = vmul.f32 %v942, 0.027777778
      %s944 = scalar_lea.vmem %s185, 68
      %945 = vst.msk [vmem:[%s944] sm:$0xf] %vm226, %v943
      %946 = vrot.lane.b32.xlu0 %v193, 92
      %v947 = vpop.permute.xlu0 %946
      %948 = vrot.lane.b32.xlu0 %v194, 92
      %v949 = vpop.permute.xlu0 %948
      %950 = vrot.lane.b32.xlu0 %v195, 92
      %v951 = vpop.permute.xlu0 %950
      %952 = vrot.lane.b32.xlu0 %v196, 92
      %v953 = vpop.permute.xlu0 %952
      %v958 = vmul.f32 %v187, %v947
      %v959 = vmul.f32 %v188, %v949
      %v960 = vmul.f32 %v189, %v951
      %v961 = vmul.f32 %v190, %v953
      %v962 = vsel %vm201, %v958, 0.0
      %v963 = vsel %vm201, %v959, 0.0
      %v964 = vadd.f32 %v962, %v963
      %v965 = vsel %vm201, %v960, 0.0
      %v966 = vadd.f32 %v964, %v965
      %v967 = vsel %vm201, %v961, 0.0
      %v968 = vadd.f32 %v966, %v967
      %970 = vrot.lane.b32.xlu0 %v968, 127
      %v971 = vpop.permute.xlu0 %970
      %v973 = vadd.f32 %v968, %v971
      %974 = vrot.lane.b32.xlu0 %v968, 126
      %v975 = vpop.permute.xlu0 %974
      %v977 = vadd.f32 %v973, %v975
      %v979 = vrot.slane %v977, 1
      %v981 = vadd.f32 %v977, %v979
      %v982 = vrot.slane %v977, 2
      %v984 = vadd.f32 %v981, %v982
      %v985 = vmul.f32 %v984, 0.027777778
      %s986 = scalar_lea.vmem %s185, 72
      %987 = vst.msk [vmem:[%s986] sm:$0xf] %vm226, %v985
      %988 = vrot.lane.b32.xlu0 %v193, 90
      %v989 = vpop.permute.xlu0 %988
      %990 = vrot.lane.b32.xlu0 %v194, 90
      %v991 = vpop.permute.xlu0 %990
      %992 = vrot.lane.b32.xlu0 %v195, 90
      %v993 = vpop.permute.xlu0 %992
      %994 = vrot.lane.b32.xlu0 %v196, 90
      %v995 = vpop.permute.xlu0 %994
      %v1000 = vmul.f32 %v187, %v989
      %v1001 = vmul.f32 %v188, %v991
      %v1002 = vmul.f32 %v189, %v993
      %v1003 = vmul.f32 %v190, %v995
      %v1004 = vsel %vm201, %v1000, 0.0
      %v1005 = vsel %vm201, %v1001, 0.0
      %v1006 = vadd.f32 %v1004, %v1005
      %v1007 = vsel %vm201, %v1002, 0.0
      %v1008 = vadd.f32 %v1006, %v1007
      %v1009 = vsel %vm201, %v1003, 0.0
      %v1010 = vadd.f32 %v1008, %v1009
      %1012 = vrot.lane.b32.xlu0 %v1010, 127
      %v1013 = vpop.permute.xlu0 %1012
      %v1015 = vadd.f32 %v1010, %v1013
      %1016 = vrot.lane.b32.xlu0 %v1010, 126
      %v1017 = vpop.permute.xlu0 %1016
      %v1019 = vadd.f32 %v1015, %v1017
      %v1021 = vrot.slane %v1019, 1
      %v1023 = vadd.f32 %v1019, %v1021
      %v1024 = vrot.slane %v1019, 2
      %v1026 = vadd.f32 %v1023, %v1024
      %v1027 = vmul.f32 %v1026, 0.027777778
      %s1028 = scalar_lea.vmem %s185, 76
      %1029 = vst.msk [vmem:[%s1028] sm:$0xf] %vm226, %v1027
      %1030 = vrot.lane.b32.xlu0 %v193, 88
      %v1031 = vpop.permute.xlu0 %1030
      %1032 = vrot.lane.b32.xlu0 %v194, 88
      %v1033 = vpop.permute.xlu0 %1032
      %1034 = vrot.lane.b32.xlu0 %v195, 88
      %v1035 = vpop.permute.xlu0 %1034
      %1036 = vrot.lane.b32.xlu0 %v196, 88
      %v1037 = vpop.permute.xlu0 %1036
      %v1042 = vmul.f32 %v187, %v1031
      %v1043 = vmul.f32 %v188, %v1033
      %v1044 = vmul.f32 %v189, %v1035
      %v1045 = vmul.f32 %v190, %v1037
      %v1046 = vsel %vm201, %v1042, 0.0
      %v1047 = vsel %vm201, %v1043, 0.0
      %v1048 = vadd.f32 %v1046, %v1047
      %v1049 = vsel %vm201, %v1044, 0.0
      %v1050 = vadd.f32 %v1048, %v1049
      %v1051 = vsel %vm201, %v1045, 0.0
      %v1052 = vadd.f32 %v1050, %v1051
      %1054 = vrot.lane.b32.xlu0 %v1052, 127
      %v1055 = vpop.permute.xlu0 %1054
      %v1057 = vadd.f32 %v1052, %v1055
      %1058 = vrot.lane.b32.xlu0 %v1052, 126
      %v1059 = vpop.permute.xlu0 %1058
      %v1061 = vadd.f32 %v1057, %v1059
      %v1063 = vrot.slane %v1061, 1
      %v1065 = vadd.f32 %v1061, %v1063
      %v1066 = vrot.slane %v1061, 2
      %v1068 = vadd.f32 %v1065, %v1066
      %v1069 = vmul.f32 %v1068, 0.027777778
      %s1070 = scalar_lea.vmem %s185, 80
      %1071 = vst.msk [vmem:[%s1070] sm:$0xf] %vm226, %v1069
      %s1072 = smul.u32 21, %s18
      %p1073 = scmp.lt.s32.totalorder %s17, 1
      %s1074 = scalar_select %p1073, %s17, 1
      %p1075 = scmp.lt.s32.totalorder %s1072, 440
      %s1076 = scalar_select %p1075, %s1072, 440
      %s1077 = smul.addr %s1074, 441
      %s1078 = sadd.s32 %s1076, %s1077
      %s1079 = smul.addr %s1078, 4
      %s1080 = scalar_lea.vmem %s2, %s1079
      // Predicated region
      $region29: #{tpu_custom_call.1} parent=27 // pred_check
        %p1081 = pneg %p97
      $region30: #{tpu_custom_call.1} parent=27 // pred_check_branch
        %1083 = sbr.rel (%p1081) target = $region32
      $region31: #{tpu_custom_call.1} parent=27 // pred_region
        %s1084 = smul.u32 21, %s18
      $region32: #{tpu_custom_call.1} parent=27 // pred_fallthru
        _
    $region28: #{tpu_custom_call.1} parent=5 // pred_fallthru
      _
    %p1085 = scmp.le.s32.totalorder 2, %s8
    // Predicated region
    $region33: #{tpu_custom_call.1} parent=5 // pred_check
      %p1086 = pneg %p1085
    $region34: #{tpu_custom_call.1} parent=5 // pred_check_branch
      %1088 = sbr.rel (%p1086) target = $region36
    $region35: #{tpu_custom_call.1} parent=5 // pred_region
      %s1089 = ssub.s32 %s8, 2
      // Predicated region
      $region37: #{tpu_custom_call.1} parent=35 // pred_check
        %p1090 = pneg %p103
      $region38: #{tpu_custom_call.1} parent=35 // pred_check_branch
        %1092 = sbr.rel (%p1090) target = $region40
      $region39: #{tpu_custom_call.1} parent=35 // pred_region
        %s1093 = smul.u32 21, %s20
        %p1094 = scmp.lt.s32.totalorder %s19, 1
        %s1095 = scalar_select %p1094, %s19, 1
        %p1096 = scmp.lt.s32.totalorder %s1093, 440
        %s1097 = scalar_select %p1096, %s1093, 440
        %s1098 = smul.addr %s1095, 441
        %s1099 = sadd.s32 %s1097, %s1098
        %s1100 = smul.addr %s1099, 4
        %s1101 = scalar_lea.vmem %s2, %s1100
      $region40: #{tpu_custom_call.1} parent=35 // pred_fallthru
        _
    $region36: #{tpu_custom_call.1} parent=5 // pred_fallthru
      _
  $region6: #{tpu_custom_call.1} parent=0 // loop_footer
    %s12 = sadd.s32 1, %s8
  $region7: #{tpu_custom_call.1} parent=0 // loop_footer_branch
    %7 = sbr.rel target = $region3
  $region8: #{tpu_custom_call.1} parent=0 // loop_exit
    _

</llo_original>
